<compile_context>
chip_gen: v7x
topology: tpu7x:2x2x1
jax: 0.10.0
libtpu: 0.0.40
codegen_flags: <defaults>
</compile_context>

<pallas_src>
import functools

import jax
import jax.numpy as jnp
from jax import lax
from jax.experimental import pallas as pl
from jax.experimental.pallas import tpu as pltpu

_NEG_INF = -1e30

_VMEM_LIMIT_CACHE = None


def _vmem_limit():
    """~3/4 of physical VMEM, capped at 100 MiB (96 MiB on v5e/v6e, 48 MiB on v7x)."""
    global _VMEM_LIMIT_CACHE
    if _VMEM_LIMIT_CACHE is None:
        try:
            cap = int(getattr(pltpu.get_tpu_info(), "vmem_capacity_bytes", 0)) or (64 << 20)
        except Exception:
            cap = 64 << 20
        _VMEM_LIMIT_CACHE = max(32 << 20, min((cap * 3) // 4, 100 << 20))
    return _VMEM_LIMIT_CACHE


# ----------------------------- in-kernel helpers -----------------------------

def _layer_norm(x, w, b, eps=1e-5):
    mu = jnp.mean(x, axis=-1, keepdims=True)
    var = jnp.mean((x - mu) ** 2, axis=-1, keepdims=True)
    return (x - mu) * lax.rsqrt(var + eps) * w + b


def _gelu_exact(x):
    # nn.GELU() default == exact (erf-based) GELU.
    return 0.5 * x * (1.0 + lax.erf(x * 0.7071067811865475))


# ------------------------------ Pallas kernels -------------------------------

def block_kernel(xq_ref,
                 wq_ref, wk_ref, wv_ref, wproj_ref, bproj_ref,
                 ln1w_ref, ln1b_ref, ln2w_ref, ln2b_ref,
                 wff1_ref, bff1_ref, wff2_ref, bff2_ref,
                 lnfw_ref, lnfb_ref,
                 out_ref, k_scr, v_scr, att_scr,
                 *, n_head, apply_final_ln):
    """One transformer Block (pre-LN causal MHA + FFN, residuals).

    Grid = (batch, query_tile).  K/V are appended incrementally into VMEM
    scratch (q axis is "arbitrary" so the carry across query tiles is legal);
    attention runs an online softmax over the causally-bounded key tiles.
    """
    q_idx = pl.program_id(1)
    T, C = k_scr.shape
    TQ = xq_ref.shape[1]
    hs = C // n_head
    scale = 1.0 / (hs ** 0.5)

    # ---- ln1 + Q/K/V projections for this tile only ----
    x_q = xq_ref[0]                                              # (TQ, C) f32
    xn_q = _layer_norm(x_q, ln1w_ref[0], ln1b_ref[0]).astype(jnp.bfloat16)

    q_all = jnp.dot(xn_q, wq_ref[...],
                    preferred_element_type=jnp.float32).astype(jnp.bfloat16)
    k_tile = jnp.dot(xn_q, wk_ref[...],
                     preferred_element_type=jnp.float32).astype(jnp.bfloat16)
    v_tile = jnp.dot(xn_q, wv_ref[...],
                     preferred_element_type=jnp.float32).astype(jnp.bfloat16)

    row0 = pl.multiple_of(q_idx * TQ, TQ)
    k_scr[pl.ds(row0, TQ), :] = k_tile                           # append K
    v_scr[pl.ds(row0, TQ), :] = v_tile                           # append V

    # ---- causal online softmax over key tiles 0..q_idx ----
    q_rows = q_idx * TQ + lax.broadcasted_iota(jnp.int32, (TQ, TQ), 0)
    col_iota = lax.broadcasted_iota(jnp.int32, (TQ, TQ), 1)

    def kv_step(kt, carry):
        k0 = pl.multiple_of(kt * TQ, TQ)
        k_t = k_scr[pl.ds(k0, TQ), :]                            # (TQ, C) bf16
        v_t = v_scr[pl.ds(k0, TQ), :]
        mask = (kt * TQ + col_iota) <= q_rows                    # all-True off-diag
        new = []
        for h in range(n_head):                                  # static loop
            sl = slice(h * hs, (h + 1) * hs)
            m_h, l_h, acc_h = carry[h]
            # Contract last dims of q and k directly (no k.T / XLU transpose).
            s = lax.dot_general(q_all[:, sl], k_t[:, sl],
                                (((1,), (1,)), ((), ())),
                                preferred_element_type=jnp.float32) * scale
            s = jnp.where(mask, s, _NEG_INF)
            m_new = jnp.maximum(m_h, jnp.max(s, axis=-1, keepdims=True))
            alpha = jnp.exp(m_h - m_new)
            p = jnp.exp(s - m_new)
            l_new = alpha * l_h + jnp.sum(p, axis=-1, keepdims=True)
            acc_new = alpha * acc_h + jnp.dot(p.astype(jnp.bfloat16), v_t[:, sl],
                                              preferred_element_type=jnp.float32)
            new.append((m_new, l_new, acc_new))
        return tuple(new)

    init = tuple((jnp.full((TQ, 1), _NEG_INF, jnp.float32),
                  jnp.zeros((TQ, 1), jnp.float32),
                  jnp.zeros((TQ, hs), jnp.float32)) for _ in range(n_head))
    carry = lax.fori_loop(0, q_idx + 1, kv_step, init)

    for h in range(n_head):                                      # assemble heads
        m_h, l_h, acc_h = carry[h]
        att_scr[:, h * hs:(h + 1) * hs] = (
            acc_h * pl.reciprocal(l_h, approx=True)).astype(jnp.bfloat16)

    att = jnp.dot(att_scr[...], wproj_ref[...],
                  preferred_element_type=jnp.float32) + bproj_ref[0]
    x1 = x_q + att                                               # residual (f32)

    # ---- ln2 + feed-forward ----
    xn2 = _layer_norm(x1, ln2w_ref[0], ln2b_ref[0]).astype(jnp.bfloat16)
    h1 = jnp.dot(xn2, wff1_ref[...], preferred_element_type=jnp.float32) + bff1_ref[0]
    h1 = _gelu_exact(h1).astype(jnp.bfloat16)
    h2 = jnp.dot(h1, wff2_ref[...], preferred_element_type=jnp.float32) + bff2_ref[0]
    x2 = x1 + h2

    if apply_final_ln:                                           # fused ln_f (last layer)
        x2 = _layer_norm(x2, lnfw_ref[0], lnfb_ref[0])
    out_ref[0] = x2


def lm_head_kernel(x_ref, wlm_ref, blm_ref, out_ref):
    """lm_head projection for one (vocab tile, batch row, seq tile).  ln_f was
    already applied by the last block."""
    xn = x_ref[0].astype(jnp.bfloat16)
    out_ref[0] = (jnp.dot(xn, wlm_ref[...], preferred_element_type=jnp.float32)
                  + blm_ref[0])


# ------------------------------ Python wrappers -------------------------------

def _round_up(n, m):
    return ((n + m - 1) // m) * m


def _choose_tile(n, target, align=128):
    """Largest tile <= target that divides n (prefer multiples of `align`)."""
    if n <= target:
        return n
    t = (target // align) * align
    while t >= align:
        if n % t == 0:
            return t
        t -= align
    for t in range(min(target, n), 7, -1):
        if n % t == 0 and t % 8 == 0:
            return t
    return n


def run_block(x, lp, lnfw, lnfb, n_head, apply_final_ln):
    B, T, C = x.shape
    TQ = _choose_tile(T, 256)        # query-tile size ((8,128)-friendly)
    NQ = T // TQ

    # Whole-array single-buffered VMEM residents (constant across the grid).
    wspec = pl.BlockSpec(memory_space=pltpu.MemorySpace.VMEM)

    in_specs = [pl.BlockSpec((1, TQ, C), lambda b, q: (b, q, 0))] + [wspec] * 15

    return pl.pallas_call(
        functools.partial(block_kernel, n_head=n_head,
                          apply_final_ln=apply_final_ln),
        out_shape=jax.ShapeDtypeStruct((B, T, C), jnp.float32),
        grid=(B, NQ),
        in_specs=in_specs,
        out_specs=pl.BlockSpec((1, TQ, C), lambda b, q: (b, q, 0)),
        scratch_shapes=[
            pltpu.VMEM((T, C), jnp.bfloat16),    # K, appended incrementally
            pltpu.VMEM((T, C), jnp.bfloat16),    # V, appended incrementally
            pltpu.VMEM((TQ, C), jnp.bfloat16),   # per-head attention outputs
        ],
        compiler_params=pltpu.CompilerParams(
            dimension_semantics=("parallel", "arbitrary"),
            vmem_limit_bytes=_vmem_limit()),
    )(x,
      lp["wq"], lp["wk"], lp["wv"], lp["wproj"], lp["bproj"],
      lp["ln1w"], lp["ln1b"], lp["ln2w"], lp["ln2b"],
      lp["wff1"], lp["bff1"], lp["wff2"], lp["bff2"],
      lnfw, lnfb)


def run_lm_head(x, wlm, blm):
    B, T, C = x.shape
    V = wlm.shape[1]

    # Pad the vocab to a lane-aligned multiple of the vocab tile (handles
    # GPT-2's 50257); the pad is sliced off after the kernel.
    Vp = _round_up(V, 128)
    TV = min(2048, Vp)
    Vp = _round_up(Vp, TV)
    if Vp != V:
        wlm = jnp.pad(wlm, ((0, 0), (0, Vp - V)))
        blm = jnp.pad(blm, ((0, 0), (0, Vp - V)))
    NV = Vp // TV

    TT = _choose_tile(T, 256)
    NT = T // TT

    in_specs = [
        pl.BlockSpec((1, TT, C), lambda j, b, t: (b, t, 0)),
        pl.BlockSpec((C, TV), lambda j, b, t: (0, j)),     # weight: constant over (b,t)
        pl.BlockSpec((1, TV), lambda j, b, t: (0, j)),
    ]
    out = pl.pallas_call(
        lm_head_kernel,
        out_shape=jax.ShapeDtypeStruct((B, T, Vp), jnp.float32),
        grid=(NV, B, NT),            # vocab outermost: weight streams once
        in_specs=in_specs,
        out_specs=pl.BlockSpec((1, TT, TV), lambda j, b, t: (b, t, j)),
        compiler_params=pltpu.CompilerParams(
            dimension_semantics=("parallel", "parallel", "parallel"),
            vmem_limit_bytes=_vmem_limit()),
    )(x, wlm, blm)
    if Vp != V:
        out = out[:, :, :V]
    return out


def gpt_forward(index, params, n_head):
    """Full GPTLanguageModel.forward (targets=None path): returns logits (B,T,V)."""
    B, T = index.shape
    # Embedding lookups + add — glue in plain JAX (gather).
    tok_emb = params["tok_table"][index]          # (B, T, C)
    pos_emb = params["pos_table"][:T]             # (T, C)
    x = (tok_emb + pos_emb).astype(jnp.float32)

    n_layer = len(params["blocks"])
    if n_layer == 0:                              # degenerate: apply ln_f in JAX
        mu = jnp.mean(x, -1, keepdims=True)
        var = jnp.mean((x - mu) ** 2, -1, keepdims=True)
        x = (x - mu) * lax.rsqrt(var + 1e-5) * params["lnfw"][0] + params["lnfb"][0]
    for i, lp in enumerate(params["blocks"]):
        x = run_block(x, lp, params["lnfw"], params["lnfb"], n_head,
                      apply_final_ln=(i == n_layer - 1))
    logits = run_lm_head(x, params["wlm"], params["blm"])
    return logits


# ------------------------------ parameter init -------------------------------

def init_params(key, vocab_size, block_size, n_embd, n_head, n_layer):
    """Mirror _init_weights: N(0, 0.02) Linear/Embedding, zero bias, LN w=1 b=0.
    Matmul weights stored in bf16 (MXU-native); biases/LN/embeddings in f32."""
    std = 0.02
    keys = iter(jax.random.split(key, 3 + n_layer * 6))
    nk = lambda: next(keys)

    def normal(shape, dtype=jnp.float32):
        return (std * jax.random.normal(nk(), shape, dtype=jnp.float32)).astype(dtype)

    params = {
        "tok_table": normal((vocab_size, n_embd)),
        "pos_table": normal((block_size, n_embd)),
        "lnfw": jnp.ones((1, n_embd), jnp.float32),
        "lnfb": jnp.zeros((1, n_embd), jnp.float32),
        "wlm": normal((n_embd, vocab_size), jnp.bfloat16),
        "blm": jnp.zeros((1, vocab_size), jnp.float32),
        "blocks": [],
    }
    for _ in range(n_layer):
        lp = {
            "wq": normal((n_embd, n_embd), jnp.bfloat16),
            "wk": normal((n_embd, n_embd), jnp.bfloat16),
            "wv": normal((n_embd, n_embd), jnp.bfloat16),
            "wproj": normal((n_embd, n_embd), jnp.bfloat16),
            "bproj": jnp.zeros((1, n_embd), jnp.float32),
            "ln1w": jnp.ones((1, n_embd), jnp.float32),
            "ln1b": jnp.zeros((1, n_embd), jnp.float32),
            "ln2w": jnp.ones((1, n_embd), jnp.float32),
            "ln2b": jnp.zeros((1, n_embd), jnp.float32),
            "wff1": normal((n_embd, 4 * n_embd), jnp.bfloat16),
            "bff1": jnp.zeros((1, 4 * n_embd), jnp.float32),
            "wff2": normal((4 * n_embd, n_embd), jnp.bfloat16),
            "bff2": jnp.zeros((1, n_embd), jnp.float32),
        }
        params["blocks"].append(lp)
    return params


# ----------------------------------- main -------------------------------------

if __name__ == "__main__":
    # Small, module-consistent hyperparameters.
    B, T = 2, 8
    block_size = 8
    n_embd = 32
    n_head = 4
    n_layer = 2
    vocab_size = 128     # synthetic small vocab (real model uses tiktoken gpt2)

    key = jax.random.PRNGKey(0)
    k_params, k_idx = jax.random.split(key)
    params = init_params(k_params, vocab_size, block_size, n_embd, n_head, n_layer)
    index = jax.random.randint(k_idx, (B, T), 0, vocab_size, dtype=jnp.int32)

    logits = gpt_forward(index, params, n_head)
    jax.block_until_ready(logits)
    assert logits.shape == (B, T, vocab_size)
    # targets=None path -> loss is None in the reference module; only logits produced.
    # TODO(synk): generate() sampling loop (top-k/top-p/multinomial) not implemented.
    print("KERNEL_OK")
</pallas_src>

<mosaic_0001>
module attributes {stable_mosaic.version = 11 : i64} {
  func.func @block_kernel(%arg0: i32, %arg1: i32, %arg2: memref<1x8x32xf32, #tpu.memory_space<vmem>>, %arg3: memref<32x32xbf16, #tpu.memory_space<vmem>>, %arg4: memref<32x32xbf16, #tpu.memory_space<vmem>>, %arg5: memref<32x32xbf16, #tpu.memory_space<vmem>>, %arg6: memref<32x32xbf16, #tpu.memory_space<vmem>>, %arg7: memref<1x32xf32, #tpu.memory_space<vmem>>, %arg8: memref<1x32xf32, #tpu.memory_space<vmem>>, %arg9: memref<1x32xf32, #tpu.memory_space<vmem>>, %arg10: memref<1x32xf32, #tpu.memory_space<vmem>>, %arg11: memref<1x32xf32, #tpu.memory_space<vmem>>, %arg12: memref<32x128xbf16, #tpu.memory_space<vmem>>, %arg13: memref<1x128xf32, #tpu.memory_space<vmem>>, %arg14: memref<128x32xbf16, #tpu.memory_space<vmem>>, %arg15: memref<1x32xf32, #tpu.memory_space<vmem>>, %arg16: memref<1x32xf32, #tpu.memory_space<vmem>>, %arg17: memref<1x32xf32, #tpu.memory_space<vmem>>, %arg18: memref<1x8x32xf32, #tpu.memory_space<vmem>>, %arg19: memref<8x32xbf16, #tpu.memory_space<vmem>>, %arg20: memref<8x32xbf16, #tpu.memory_space<vmem>>, %arg21: memref<8x32xbf16, #tpu.memory_space<vmem>>) attributes {dimension_semantics = [#tpu.dimension_semantics<parallel>, #tpu.dimension_semantics<arbitrary>], iteration_bounds = array<i64: 2, 1>, scalar_prefetch = 0 : i64, scratch_operands = 3 : i64, tpu.core_type = #tpu.core_type<tc>, window_params = [{transform_indices = @transform_0, window_bounds = array<i64: 1, 8, 32>}, {pipeline_mode = #tpu.pipeline_mode<synchronous>, transform_indices = @transform_1, window_bounds = array<i64: 32, 32>}, {pipeline_mode = #tpu.pipeline_mode<synchronous>, transform_indices = @transform_2, window_bounds = array<i64: 32, 32>}, {pipeline_mode = #tpu.pipeline_mode<synchronous>, transform_indices = @transform_3, window_bounds = array<i64: 32, 32>}, {pipeline_mode = #tpu.pipeline_mode<synchronous>, transform_indices = @transform_4, window_bounds = array<i64: 32, 32>}, {pipeline_mode = #tpu.pipeline_mode<synchronous>, transform_indices = @transform_5, window_bounds = array<i64: 1, 32>}, {pipeline_mode = #tpu.pipeline_mode<synchronous>, transform_indices = @transform_6, window_bounds = array<i64: 1, 32>}, {pipeline_mode = #tpu.pipeline_mode<synchronous>, transform_indices = @transform_7, window_bounds = array<i64: 1, 32>}, {pipeline_mode = #tpu.pipeline_mode<synchronous>, transform_indices = @transform_8, window_bounds = array<i64: 1, 32>}, {pipeline_mode = #tpu.pipeline_mode<synchronous>, transform_indices = @transform_9, window_bounds = array<i64: 1, 32>}, {pipeline_mode = #tpu.pipeline_mode<synchronous>, transform_indices = @transform_10, window_bounds = array<i64: 32, 128>}, {pipeline_mode = #tpu.pipeline_mode<synchronous>, transform_indices = @transform_11, window_bounds = array<i64: 1, 128>}, {pipeline_mode = #tpu.pipeline_mode<synchronous>, transform_indices = @transform_12, window_bounds = array<i64: 128, 32>}, {pipeline_mode = #tpu.pipeline_mode<synchronous>, transform_indices = @transform_13, window_bounds = array<i64: 1, 32>}, {pipeline_mode = #tpu.pipeline_mode<synchronous>, transform_indices = @transform_14, window_bounds = array<i64: 1, 32>}, {pipeline_mode = #tpu.pipeline_mode<synchronous>, transform_indices = @transform_15, window_bounds = array<i64: 1, 32>}, {transform_indices = @transform_16, window_bounds = array<i64: 1, 8, 32>}]} {
    %c0 = arith.constant 0 : index
    %c0_0 = arith.constant 0 : index
    %c0_1 = arith.constant 0 : index
    %0 = vector.load %arg2[%c0, %c0_0, %c0_1] : memref<1x8x32xf32, #tpu.memory_space<vmem>>, vector<1x8x32xf32>
    %1 = vector.shape_cast %0 : vector<1x8x32xf32> to vector<8x32xf32>
    %c0_2 = arith.constant 0 : index
    %c0_3 = arith.constant 0 : index
    %2 = vector.load %arg8[%c0_2, %c0_3] : memref<1x32xf32, #tpu.memory_space<vmem>>, vector<1x32xf32>
    %3 = vector.shape_cast %2 : vector<1x32xf32> to vector<32xf32>
    %c0_4 = arith.constant 0 : index
    %c0_5 = arith.constant 0 : index
    %4 = vector.load %arg9[%c0_4, %c0_5] : memref<1x32xf32, #tpu.memory_space<vmem>>, vector<1x32xf32>
    %5 = vector.shape_cast %4 : vector<1x32xf32> to vector<32xf32>
    %cst = arith.constant dense<0.000000e+00> : vector<8xf32>
    %6 = vector.multi_reduction <add>, %1, %cst [1] : vector<8x32xf32> to vector<8xf32>
    %7 = vector.shape_cast %6 : vector<8xf32> to vector<8x1xf32>
    %cst_6 = arith.constant 3.200000e+01 : f32
    %8 = vector.broadcast %cst_6 : f32 to vector<8x1xf32>
    %9 = arith.divf %7, %8 : vector<8x1xf32>
    %10 = vector.broadcast %9 : vector<8x1xf32> to vector<8x32xf32>
    %11 = arith.subf %1, %10 : vector<8x32xf32>
    %12 = arith.mulf %11, %11 : vector<8x32xf32>
    %cst_7 = arith.constant dense<0.000000e+00> : vector<8xf32>
    %13 = vector.multi_reduction <add>, %12, %cst_7 [1] : vector<8x32xf32> to vector<8xf32>
    %14 = vector.shape_cast %13 : vector<8xf32> to vector<8x1xf32>
    %cst_8 = arith.constant 3.200000e+01 : f32
    %15 = vector.broadcast %cst_8 : f32 to vector<8x1xf32>
    %16 = arith.divf %14, %15 : vector<8x1xf32>
    %17 = vector.broadcast %9 : vector<8x1xf32> to vector<8x32xf32>
    %18 = arith.subf %1, %17 : vector<8x32xf32>
    %cst_9 = arith.constant 9.99999974E-6 : f32
    %19 = vector.broadcast %cst_9 : f32 to vector<8x1xf32>
    %20 = arith.addf %16, %19 : vector<8x1xf32>
    %21 = math.rsqrt %20 : vector<8x1xf32>
    %22 = vector.broadcast %21 : vector<8x1xf32> to vector<8x32xf32>
    %23 = arith.mulf %18, %22 : vector<8x32xf32>
    %24 = vector.shape_cast %3 : vector<32xf32> to vector<1x32xf32>
    %25 = vector.broadcast %24 : vector<1x32xf32> to vector<8x32xf32>
    %26 = arith.mulf %23, %25 : vector<8x32xf32>
    %27 = vector.shape_cast %5 : vector<32xf32> to vector<1x32xf32>
    %28 = vector.broadcast %27 : vector<1x32xf32> to vector<8x32xf32>
    %29 = arith.addf %26, %28 : vector<8x32xf32>
    %30 = arith.truncf %29 : vector<8x32xf32> to vector<8x32xbf16>
    %c0_10 = arith.constant 0 : index
    %c0_11 = arith.constant 0 : index
    %31 = vector.load %arg3[%c0_10, %c0_11] : memref<32x32xbf16, #tpu.memory_space<vmem>>, vector<32x32xbf16>
    %cst_12 = arith.constant dense<0.000000e+00> : vector<8x32xf32>
    %32 = tpu.matmul %30, %31, %cst_12 {dimension_numbers = #tpu.dot_dimension_numbers<[1], [0], [0], [1], [0, 0, 1, 1], [], []>} : vector<8x32xbf16>, vector<32x32xbf16>, vector<8x32xf32> -> vector<8x32xf32>
    %33 = arith.truncf %32 : vector<8x32xf32> to vector<8x32xbf16>
    %c0_13 = arith.constant 0 : index
    %c0_14 = arith.constant 0 : index
    %34 = vector.load %arg4[%c0_13, %c0_14] : memref<32x32xbf16, #tpu.memory_space<vmem>>, vector<32x32xbf16>
    %cst_15 = arith.constant dense<0.000000e+00> : vector<8x32xf32>
    %35 = tpu.matmul %30, %34, %cst_15 {dimension_numbers = #tpu.dot_dimension_numbers<[1], [0], [0], [1], [0, 0, 1, 1], [], []>} : vector<8x32xbf16>, vector<32x32xbf16>, vector<8x32xf32> -> vector<8x32xf32>
    %36 = arith.truncf %35 : vector<8x32xf32> to vector<8x32xbf16>
    %c0_16 = arith.constant 0 : index
    %c0_17 = arith.constant 0 : index
    %37 = vector.load %arg5[%c0_16, %c0_17] : memref<32x32xbf16, #tpu.memory_space<vmem>>, vector<32x32xbf16>
    %cst_18 = arith.constant dense<0.000000e+00> : vector<8x32xf32>
    %38 = tpu.matmul %30, %37, %cst_18 {dimension_numbers = #tpu.dot_dimension_numbers<[1], [0], [0], [1], [0, 0, 1, 1], [], []>} : vector<8x32xbf16>, vector<32x32xbf16>, vector<8x32xf32> -> vector<8x32xf32>
    %39 = arith.truncf %38 : vector<8x32xf32> to vector<8x32xbf16>
    %c8_i32 = arith.constant 8 : i32
    %40 = arith.muli %arg1, %c8_i32 : i32
    %41 = tpu.assume_multiple %40, 8 : i32
    %42 = arith.index_cast %41 : i32 to index
    %c0_19 = arith.constant 0 : index
    %43 = vector.load %arg19[%42, %c0_19] : memref<8x32xbf16, #tpu.memory_space<vmem>>, vector<8x32xbf16>
    tpu.vector_store %arg19[%42, %c0_19], %36 {strides = array<i32>} : memref<8x32xbf16, #tpu.memory_space<vmem>>, vector<8x32xbf16>,
    %44 = arith.index_cast %41 : i32 to index
    %c0_20 = arith.constant 0 : index
    %45 = vector.load %arg20[%44, %c0_20] : memref<8x32xbf16, #tpu.memory_space<vmem>>, vector<8x32xbf16>
    tpu.vector_store %arg20[%44, %c0_20], %39 {strides = array<i32>} : memref<8x32xbf16, #tpu.memory_space<vmem>>, vector<8x32xbf16>,
    %c8_i32_21 = arith.constant 8 : i32
    %46 = arith.muli %arg1, %c8_i32_21 : i32
    %47 = tpu.iota {dimensions = array<i32: 0>} : vector<8x8xi32>
    %48 = vector.broadcast %46 : i32 to vector<8x8xi32>
    %49 = arith.addi %48, %47 : vector<8x8xi32>
    %50 = tpu.iota {dimensions = array<i32: 1>} : vector<8x8xi32>
    %cst_22 = arith.constant -1.000000e+30 : f32
    %51 = vector.broadcast %cst_22 : f32 to vector<8x1xf32>
    %cst_23 = arith.constant 0.000000e+00 : f32
    %52 = vector.broadcast %cst_23 : f32 to vector<8x1xf32>
    %cst_24 = arith.constant 0.000000e+00 : f32
    %53 = vector.broadcast %cst_24 : f32 to vector<8x8xf32>
    %cst_25 = arith.constant -1.000000e+30 : f32
    %54 = vector.broadcast %cst_25 : f32 to vector<8x1xf32>
    %cst_26 = arith.constant 0.000000e+00 : f32
    %55 = vector.broadcast %cst_26 : f32 to vector<8x1xf32>
    %cst_27 = arith.constant 0.000000e+00 : f32
    %56 = vector.broadcast %cst_27 : f32 to vector<8x8xf32>
    %cst_28 = arith.constant -1.000000e+30 : f32
    %57 = vector.broadcast %cst_28 : f32 to vector<8x1xf32>
    %cst_29 = arith.constant 0.000000e+00 : f32
    %58 = vector.broadcast %cst_29 : f32 to vector<8x1xf32>
    %cst_30 = arith.constant 0.000000e+00 : f32
    %59 = vector.broadcast %cst_30 : f32 to vector<8x8xf32>
    %cst_31 = arith.constant -1.000000e+30 : f32
    %60 = vector.broadcast %cst_31 : f32 to vector<8x1xf32>
    %cst_32 = arith.constant 0.000000e+00 : f32
    %61 = vector.broadcast %cst_32 : f32 to vector<8x1xf32>
    %cst_33 = arith.constant 0.000000e+00 : f32
    %62 = vector.broadcast %cst_33 : f32 to vector<8x8xf32>
    %c1_i32 = arith.constant 1 : i32
    %63 = arith.addi %arg1, %c1_i32 : i32
    %c0_i32 = arith.constant 0 : i32
    %64 = arith.subi %63, %c0_i32 : i32
    %65 = arith.addi %c0_i32, %64 : i32
    %c1_i32_34 = arith.constant 1 : i32
    %66:12 = scf.for %arg22 = %c0_i32 to %65 step %c1_i32_34 iter_args(%arg23 = %51, %arg24 = %52, %arg25 = %53, %arg26 = %54, %arg27 = %55, %arg28 = %56, %arg29 = %57, %arg30 = %58, %arg31 = %59, %arg32 = %60, %arg33 = %61, %arg34 = %62) -> (vector<8x1xf32>, vector<8x1xf32>, vector<8x8xf32>, vector<8x1xf32>, vector<8x1xf32>, vector<8x8xf32>, vector<8x1xf32>, vector<8x1xf32>, vector<8x8xf32>, vector<8x1xf32>, vector<8x1xf32>, vector<8x8xf32>)  : i32 {
      %c8_i32_72 = arith.constant 8 : i32
      %152 = arith.muli %arg22, %c8_i32_72 : i32
      %153 = tpu.assume_multiple %152, 8 : i32
      %154 = arith.index_cast %153 : i32 to index
      %c0_73 = arith.constant 0 : index
      %155 = vector.load %arg19[%154, %c0_73] : memref<8x32xbf16, #tpu.memory_space<vmem>>, vector<8x32xbf16>
      %156 = arith.index_cast %153 : i32 to index
      %c0_74 = arith.constant 0 : index
      %157 = vector.load %arg20[%156, %c0_74] : memref<8x32xbf16, #tpu.memory_space<vmem>>, vector<8x32xbf16>
      %c8_i32_75 = arith.constant 8 : i32
      %158 = arith.muli %arg22, %c8_i32_75 : i32
      %159 = vector.broadcast %158 : i32 to vector<8x8xi32>
      %160 = arith.addi %159, %50 : vector<8x8xi32>
      %161 = arith.cmpi sle, %160, %49 : vector<8x8xi32>
      %162 = vector.extract_strided_slice %33 {offsets = [0, 0], sizes = [8, 8], strides = [1, 1]} : vector<8x32xbf16> to vector<8x8xbf16>
      %163 = vector.extract_strided_slice %155 {offsets = [0, 0], sizes = [8, 8], strides = [1, 1]} : vector<8x32xbf16> to vector<8x8xbf16>
      %cst_76 = arith.constant dense<0.000000e+00> : vector<8x8xf32>
      %164 = tpu.matmul %162, %163, %cst_76 {dimension_numbers = #tpu.dot_dimension_numbers<[1], [1], [0], [0], [0, 0, 1, 0], [], []>} : vector<8x8xbf16>, vector<8x8xbf16>, vector<8x8xf32> -> vector<8x8xf32>
      %cst_77 = arith.constant 0.353553385 : f32
      %165 = vector.broadcast %cst_77 : f32 to vector<8x8xf32>
      %166 = arith.mulf %164, %165 : vector<8x8xf32>
      %cst_78 = arith.constant -1.000000e+30 : f32
      %167 = vector.broadcast %cst_78 : f32 to vector<8x8xf32>
      %168 = arith.select %161, %166, %167 : vector<8x8xi1>, vector<8x8xf32>
      %cst_79 = arith.constant dense<0xFF800000> : vector<8xf32>
      %169 = vector.multi_reduction <maximumf>, %168, %cst_79 [1] : vector<8x8xf32> to vector<8xf32>
      %170 = vector.shape_cast %169 : vector<8xf32> to vector<8x1xf32>
      %171 = arith.maximumf %arg23, %170 : vector<8x1xf32>
      %172 = arith.subf %arg23, %171 : vector<8x1xf32>
      %173 = math.exp %172 : vector<8x1xf32>
      %174 = vector.broadcast %171 : vector<8x1xf32> to vector<8x8xf32>
      %175 = arith.subf %168, %174 : vector<8x8xf32>
      %176 = math.exp %175 : vector<8x8xf32>
      %177 = arith.mulf %173, %arg24 : vector<8x1xf32>
      %cst_80 = arith.constant dense<0.000000e+00> : vector<8xf32>
      %178 = vector.multi_reduction <add>, %176, %cst_80 [1] : vector<8x8xf32> to vector<8xf32>
      %179 = vector.shape_cast %178 : vector<8xf32> to vector<8x1xf32>
      %180 = arith.addf %177, %179 : vector<8x1xf32>
      %181 = vector.broadcast %173 : vector<8x1xf32> to vector<8x8xf32>
      %182 = arith.mulf %181, %arg25 : vector<8x8xf32>
      %183 = arith.truncf %176 : vector<8x8xf32> to vector<8x8xbf16>
      %184 = vector.extract_strided_slice %157 {offsets = [0, 0], sizes = [8, 8], strides = [1, 1]} : vector<8x32xbf16> to vector<8x8xbf16>
      %cst_81 = arith.constant dense<0.000000e+00> : vector<8x8xf32>
      %185 = tpu.matmul %183, %184, %cst_81 {dimension_numbers = #tpu.dot_dimension_numbers<[1], [0], [0], [1], [0, 0, 1, 1], [], []>} : vector<8x8xbf16>, vector<8x8xbf16>, vector<8x8xf32> -> vector<8x8xf32>
      %186 = arith.addf %182, %185 : vector<8x8xf32>
      %187 = vector.extract_strided_slice %33 {offsets = [0, 8], sizes = [8, 8], strides = [1, 1]} : vector<8x32xbf16> to vector<8x8xbf16>
      %188 = vector.extract_strided_slice %155 {offsets = [0, 8], sizes = [8, 8], strides = [1, 1]} : vector<8x32xbf16> to vector<8x8xbf16>
      %cst_82 = arith.constant dense<0.000000e+00> : vector<8x8xf32>
      %189 = tpu.matmul %187, %188, %cst_82 {dimension_numbers = #tpu.dot_dimension_numbers<[1], [1], [0], [0], [0, 0, 1, 0], [], []>} : vector<8x8xbf16>, vector<8x8xbf16>, vector<8x8xf32> -> vector<8x8xf32>
      %cst_83 = arith.constant 0.353553385 : f32
      %190 = vector.broadcast %cst_83 : f32 to vector<8x8xf32>
      %191 = arith.mulf %189, %190 : vector<8x8xf32>
      %cst_84 = arith.constant -1.000000e+30 : f32
      %192 = vector.broadcast %cst_84 : f32 to vector<8x8xf32>
      %193 = arith.select %161, %191, %192 : vector<8x8xi1>, vector<8x8xf32>
      %cst_85 = arith.constant dense<0xFF800000> : vector<8xf32>
      %194 = vector.multi_reduction <maximumf>, %193, %cst_85 [1] : vector<8x8xf32> to vector<8xf32>
      %195 = vector.shape_cast %194 : vector<8xf32> to vector<8x1xf32>
      %196 = arith.maximumf %arg26, %195 : vector<8x1xf32>
      %197 = arith.subf %arg26, %196 : vector<8x1xf32>
      %198 = math.exp %197 : vector<8x1xf32>
      %199 = vector.broadcast %196 : vector<8x1xf32> to vector<8x8xf32>
      %200 = arith.subf %193, %199 : vector<8x8xf32>
      %201 = math.exp %200 : vector<8x8xf32>
      %202 = arith.mulf %198, %arg27 : vector<8x1xf32>
      %cst_86 = arith.constant dense<0.000000e+00> : vector<8xf32>
      %203 = vector.multi_reduction <add>, %201, %cst_86 [1] : vector<8x8xf32> to vector<8xf32>
      %204 = vector.shape_cast %203 : vector<8xf32> to vector<8x1xf32>
      %205 = arith.addf %202, %204 : vector<8x1xf32>
      %206 = vector.broadcast %198 : vector<8x1xf32> to vector<8x8xf32>
      %207 = arith.mulf %206, %arg28 : vector<8x8xf32>
      %208 = arith.truncf %201 : vector<8x8xf32> to vector<8x8xbf16>
      %209 = vector.extract_strided_slice %157 {offsets = [0, 8], sizes = [8, 8], strides = [1, 1]} : vector<8x32xbf16> to vector<8x8xbf16>
      %cst_87 = arith.constant dense<0.000000e+00> : vector<8x8xf32>
      %210 = tpu.matmul %208, %209, %cst_87 {dimension_numbers = #tpu.dot_dimension_numbers<[1], [0], [0], [1], [0, 0, 1, 1], [], []>} : vector<8x8xbf16>, vector<8x8xbf16>, vector<8x8xf32> -> vector<8x8xf32>
      %211 = arith.addf %207, %210 : vector<8x8xf32>
      %212 = vector.extract_strided_slice %33 {offsets = [0, 16], sizes = [8, 8], strides = [1, 1]} : vector<8x32xbf16> to vector<8x8xbf16>
      %213 = vector.extract_strided_slice %155 {offsets = [0, 16], sizes = [8, 8], strides = [1, 1]} : vector<8x32xbf16> to vector<8x8xbf16>
      %cst_88 = arith.constant dense<0.000000e+00> : vector<8x8xf32>
      %214 = tpu.matmul %212, %213, %cst_88 {dimension_numbers = #tpu.dot_dimension_numbers<[1], [1], [0], [0], [0, 0, 1, 0], [], []>} : vector<8x8xbf16>, vector<8x8xbf16>, vector<8x8xf32> -> vector<8x8xf32>
      %cst_89 = arith.constant 0.353553385 : f32
      %215 = vector.broadcast %cst_89 : f32 to vector<8x8xf32>
      %216 = arith.mulf %214, %215 : vector<8x8xf32>
      %cst_90 = arith.constant -1.000000e+30 : f32
      %217 = vector.broadcast %cst_90 : f32 to vector<8x8xf32>
      %218 = arith.select %161, %216, %217 : vector<8x8xi1>, vector<8x8xf32>
      %cst_91 = arith.constant dense<0xFF800000> : vector<8xf32>
      %219 = vector.multi_reduction <maximumf>, %218, %cst_91 [1] : vector<8x8xf32> to vector<8xf32>
      %220 = vector.shape_cast %219 : vector<8xf32> to vector<8x1xf32>
      %221 = arith.maximumf %arg29, %220 : vector<8x1xf32>
      %222 = arith.subf %arg29, %221 : vector<8x1xf32>
      %223 = math.exp %222 : vector<8x1xf32>
      %224 = vector.broadcast %221 : vector<8x1xf32> to vector<8x8xf32>
      %225 = arith.subf %218, %224 : vector<8x8xf32>
      %226 = math.exp %225 : vector<8x8xf32>
      %227 = arith.mulf %223, %arg30 : vector<8x1xf32>
      %cst_92 = arith.constant dense<0.000000e+00> : vector<8xf32>
      %228 = vector.multi_reduction <add>, %226, %cst_92 [1] : vector<8x8xf32> to vector<8xf32>
      %229 = vector.shape_cast %228 : vector<8xf32> to vector<8x1xf32>
      %230 = arith.addf %227, %229 : vector<8x1xf32>
      %231 = vector.broadcast %223 : vector<8x1xf32> to vector<8x8xf32>
      %232 = arith.mulf %231, %arg31 : vector<8x8xf32>
      %233 = arith.truncf %226 : vector<8x8xf32> to vector<8x8xbf16>
      %234 = vector.extract_strided_slice %157 {offsets = [0, 16], sizes = [8, 8], strides = [1, 1]} : vector<8x32xbf16> to vector<8x8xbf16>
      %cst_93 = arith.constant dense<0.000000e+00> : vector<8x8xf32>
      %235 = tpu.matmul %233, %234, %cst_93 {dimension_numbers = #tpu.dot_dimension_numbers<[1], [0], [0], [1], [0, 0, 1, 1], [], []>} : vector<8x8xbf16>, vector<8x8xbf16>, vector<8x8xf32> -> vector<8x8xf32>
      %236 = arith.addf %232, %235 : vector<8x8xf32>
      %237 = vector.extract_strided_slice %33 {offsets = [0, 24], sizes = [8, 8], strides = [1, 1]} : vector<8x32xbf16> to vector<8x8xbf16>
      %238 = vector.extract_strided_slice %155 {offsets = [0, 24], sizes = [8, 8], strides = [1, 1]} : vector<8x32xbf16> to vector<8x8xbf16>
      %cst_94 = arith.constant dense<0.000000e+00> : vector<8x8xf32>
      %239 = tpu.matmul %237, %238, %cst_94 {dimension_numbers = #tpu.dot_dimension_numbers<[1], [1], [0], [0], [0, 0, 1, 0], [], []>} : vector<8x8xbf16>, vector<8x8xbf16>, vector<8x8xf32> -> vector<8x8xf32>
      %cst_95 = arith.constant 0.353553385 : f32
      %240 = vector.broadcast %cst_95 : f32 to vector<8x8xf32>
      %241 = arith.mulf %239, %240 : vector<8x8xf32>
      %cst_96 = arith.constant -1.000000e+30 : f32
      %242 = vector.broadcast %cst_96 : f32 to vector<8x8xf32>
      %243 = arith.select %161, %241, %242 : vector<8x8xi1>, vector<8x8xf32>
      %cst_97 = arith.constant dense<0xFF800000> : vector<8xf32>
      %244 = vector.multi_reduction <maximumf>, %243, %cst_97 [1] : vector<8x8xf32> to vector<8xf32>
      %245 = vector.shape_cast %244 : vector<8xf32> to vector<8x1xf32>
      %246 = arith.maximumf %arg32, %245 : vector<8x1xf32>
      %247 = arith.subf %arg32, %246 : vector<8x1xf32>
      %248 = math.exp %247 : vector<8x1xf32>
      %249 = vector.broadcast %246 : vector<8x1xf32> to vector<8x8xf32>
      %250 = arith.subf %243, %249 : vector<8x8xf32>
      %251 = math.exp %250 : vector<8x8xf32>
      %252 = arith.mulf %248, %arg33 : vector<8x1xf32>
      %cst_98 = arith.constant dense<0.000000e+00> : vector<8xf32>
      %253 = vector.multi_reduction <add>, %251, %cst_98 [1] : vector<8x8xf32> to vector<8xf32>
      %254 = vector.shape_cast %253 : vector<8xf32> to vector<8x1xf32>
      %255 = arith.addf %252, %254 : vector<8x1xf32>
      %256 = vector.broadcast %248 : vector<8x1xf32> to vector<8x8xf32>
      %257 = arith.mulf %256, %arg34 : vector<8x8xf32>
      %258 = arith.truncf %251 : vector<8x8xf32> to vector<8x8xbf16>
      %259 = vector.extract_strided_slice %157 {offsets = [0, 24], sizes = [8, 8], strides = [1, 1]} : vector<8x32xbf16> to vector<8x8xbf16>
      %cst_99 = arith.constant dense<0.000000e+00> : vector<8x8xf32>
      %260 = tpu.matmul %258, %259, %cst_99 {dimension_numbers = #tpu.dot_dimension_numbers<[1], [0], [0], [1], [0, 0, 1, 1], [], []>} : vector<8x8xbf16>, vector<8x8xbf16>, vector<8x8xf32> -> vector<8x8xf32>
      %261 = arith.addf %257, %260 : vector<8x8xf32>
      scf.yield %171, %180, %186, %196, %205, %211, %221, %230, %236, %246, %255, %261 : vector<8x1xf32>, vector<8x1xf32>, vector<8x8xf32>, vector<8x1xf32>, vector<8x1xf32>, vector<8x8xf32>, vector<8x1xf32>, vector<8x1xf32>, vector<8x8xf32>, vector<8x1xf32>, vector<8x1xf32>, vector<8x8xf32>
    }
    %67 = tpu.reciprocal %66#1 {approx = true} : vector<8x1xf32> -> vector<8x1xf32>
    %68 = vector.broadcast %67 : vector<8x1xf32> to vector<8x8xf32>
    %69 = arith.mulf %66#2, %68 : vector<8x8xf32>
    %70 = arith.truncf %69 : vector<8x8xf32> to vector<8x8xbf16>
    %c0_35 = arith.constant 0 : index
    %c0_36 = arith.constant 0 : index
    %71 = vector.load %arg21[%c0_35, %c0_36] : memref<8x32xbf16, #tpu.memory_space<vmem>>, vector<8x8xbf16>
    tpu.vector_store %arg21[%c0_35, %c0_36], %70 {strides = array<i32>} : memref<8x32xbf16, #tpu.memory_space<vmem>>, vector<8x8xbf16>,
    %72 = tpu.reciprocal %66#4 {approx = true} : vector<8x1xf32> -> vector<8x1xf32>
    %73 = vector.broadcast %72 : vector<8x1xf32> to vector<8x8xf32>
    %74 = arith.mulf %66#5, %73 : vector<8x8xf32>
    %75 = arith.truncf %74 : vector<8x8xf32> to vector<8x8xbf16>
    %c0_37 = arith.constant 0 : index
    %c8 = arith.constant 8 : index
    %76 = vector.load %arg21[%c0_37, %c8] : memref<8x32xbf16, #tpu.memory_space<vmem>>, vector<8x8xbf16>
    tpu.vector_store %arg21[%c0_37, %c8], %75 {strides = array<i32>} : memref<8x32xbf16, #tpu.memory_space<vmem>>, vector<8x8xbf16>,
    %77 = tpu.reciprocal %66#7 {approx = true} : vector<8x1xf32> -> vector<8x1xf32>
    %78 = vector.broadcast %77 : vector<8x1xf32> to vector<8x8xf32>
    %79 = arith.mulf %66#8, %78 : vector<8x8xf32>
    %80 = arith.truncf %79 : vector<8x8xf32> to vector<8x8xbf16>
    %c0_38 = arith.constant 0 : index
    %c16 = arith.constant 16 : index
    %81 = vector.load %arg21[%c0_38, %c16] : memref<8x32xbf16, #tpu.memory_space<vmem>>, vector<8x8xbf16>
    tpu.vector_store %arg21[%c0_38, %c16], %80 {strides = array<i32>} : memref<8x32xbf16, #tpu.memory_space<vmem>>, vector<8x8xbf16>,
    %82 = tpu.reciprocal %66#10 {approx = true} : vector<8x1xf32> -> vector<8x1xf32>
    %83 = vector.broadcast %82 : vector<8x1xf32> to vector<8x8xf32>
    %84 = arith.mulf %66#11, %83 : vector<8x8xf32>
    %85 = arith.truncf %84 : vector<8x8xf32> to vector<8x8xbf16>
    %c0_39 = arith.constant 0 : index
    %c24 = arith.constant 24 : index
    %86 = vector.load %arg21[%c0_39, %c24] : memref<8x32xbf16, #tpu.memory_space<vmem>>, vector<8x8xbf16>
    tpu.vector_store %arg21[%c0_39, %c24], %85 {strides = array<i32>} : memref<8x32xbf16, #tpu.memory_space<vmem>>, vector<8x8xbf16>,
    %c0_40 = arith.constant 0 : index
    %c0_41 = arith.constant 0 : index
    %87 = vector.load %arg21[%c0_40, %c0_41] : memref<8x32xbf16, #tpu.memory_space<vmem>>, vector<8x32xbf16>
    %c0_42 = arith.constant 0 : index
    %c0_43 = arith.constant 0 : index
    %88 = vector.load %arg6[%c0_42, %c0_43] : memref<32x32xbf16, #tpu.memory_space<vmem>>, vector<32x32xbf16>
    %cst_44 = arith.constant dense<0.000000e+00> : vector<8x32xf32>
    %89 = tpu.matmul %87, %88, %cst_44 {dimension_numbers = #tpu.dot_dimension_numbers<[1], [0], [0], [1], [0, 0, 1, 1], [], []>} : vector<8x32xbf16>, vector<32x32xbf16>, vector<8x32xf32> -> vector<8x32xf32>
    %c0_45 = arith.constant 0 : index
    %c0_46 = arith.constant 0 : index
    %90 = vector.load %arg7[%c0_45, %c0_46] : memref<1x32xf32, #tpu.memory_space<vmem>>, vector<1x32xf32>
    %91 = vector.shape_cast %90 : vector<1x32xf32> to vector<32xf32>
    %92 = vector.shape_cast %91 : vector<32xf32> to vector<1x32xf32>
    %93 = vector.broadcast %92 : vector<1x32xf32> to vector<8x32xf32>
    %94 = arith.addf %89, %93 : vector<8x32xf32>
    %95 = arith.addf %1, %94 : vector<8x32xf32>
    %c0_47 = arith.constant 0 : index
    %c0_48 = arith.constant 0 : index
    %96 = vector.load %arg10[%c0_47, %c0_48] : memref<1x32xf32, #tpu.memory_space<vmem>>, vector<1x32xf32>
    %97 = vector.shape_cast %96 : vector<1x32xf32> to vector<32xf32>
    %c0_49 = arith.constant 0 : index
    %c0_50 = arith.constant 0 : index
    %98 = vector.load %arg11[%c0_49, %c0_50] : memref<1x32xf32, #tpu.memory_space<vmem>>, vector<1x32xf32>
    %99 = vector.shape_cast %98 : vector<1x32xf32> to vector<32xf32>
    %cst_51 = arith.constant dense<0.000000e+00> : vector<8xf32>
    %100 = vector.multi_reduction <add>, %95, %cst_51 [1] : vector<8x32xf32> to vector<8xf32>
    %101 = vector.shape_cast %100 : vector<8xf32> to vector<8x1xf32>
    %cst_52 = arith.constant 3.200000e+01 : f32
    %102 = vector.broadcast %cst_52 : f32 to vector<8x1xf32>
    %103 = arith.divf %101, %102 : vector<8x1xf32>
    %104 = vector.broadcast %103 : vector<8x1xf32> to vector<8x32xf32>
    %105 = arith.subf %95, %104 : vector<8x32xf32>
    %106 = arith.mulf %105, %105 : vector<8x32xf32>
    %cst_53 = arith.constant dense<0.000000e+00> : vector<8xf32>
    %107 = vector.multi_reduction <add>, %106, %cst_53 [1] : vector<8x32xf32> to vector<8xf32>
    %108 = vector.shape_cast %107 : vector<8xf32> to vector<8x1xf32>
    %cst_54 = arith.constant 3.200000e+01 : f32
    %109 = vector.broadcast %cst_54 : f32 to vector<8x1xf32>
    %110 = arith.divf %108, %109 : vector<8x1xf32>
    %111 = vector.broadcast %103 : vector<8x1xf32> to vector<8x32xf32>
    %112 = arith.subf %95, %111 : vector<8x32xf32>
    %cst_55 = arith.constant 9.99999974E-6 : f32
    %113 = vector.broadcast %cst_55 : f32 to vector<8x1xf32>
    %114 = arith.addf %110, %113 : vector<8x1xf32>
    %115 = math.rsqrt %114 : vector<8x1xf32>
    %116 = vector.broadcast %115 : vector<8x1xf32> to vector<8x32xf32>
    %117 = arith.mulf %112, %116 : vector<8x32xf32>
    %118 = vector.shape_cast %97 : vector<32xf32> to vector<1x32xf32>
    %119 = vector.broadcast %118 : vector<1x32xf32> to vector<8x32xf32>
    %120 = arith.mulf %117, %119 : vector<8x32xf32>
    %121 = vector.shape_cast %99 : vector<32xf32> to vector<1x32xf32>
    %122 = vector.broadcast %121 : vector<1x32xf32> to vector<8x32xf32>
    %123 = arith.addf %120, %122 : vector<8x32xf32>
    %124 = arith.truncf %123 : vector<8x32xf32> to vector<8x32xbf16>
    %c0_56 = arith.constant 0 : index
    %c0_57 = arith.constant 0 : index
    %125 = vector.load %arg12[%c0_56, %c0_57] : memref<32x128xbf16, #tpu.memory_space<vmem>>, vector<32x128xbf16>
    %cst_58 = arith.constant dense<0.000000e+00> : vector<8x128xf32>
    %126 = tpu.matmul %124, %125, %cst_58 {dimension_numbers = #tpu.dot_dimension_numbers<[1], [0], [0], [1], [0, 0, 1, 1], [], []>} : vector<8x32xbf16>, vector<32x128xbf16>, vector<8x128xf32> -> vector<8x128xf32>
    %c0_59 = arith.constant 0 : index
    %c0_60 = arith.constant 0 : index
    %127 = vector.load %arg13[%c0_59, %c0_60] : memref<1x128xf32, #tpu.memory_space<vmem>>, vector<1x128xf32>
    %128 = vector.shape_cast %127 : vector<1x128xf32> to vector<128xf32>
    %129 = vector.shape_cast %128 : vector<128xf32> to vector<1x128xf32>
    %130 = vector.broadcast %129 : vector<1x128xf32> to vector<8x128xf32>
    %131 = arith.addf %126, %130 : vector<8x128xf32>
    %cst_61 = arith.constant 5.000000e-01 : f32
    %132 = vector.broadcast %cst_61 : f32 to vector<8x128xf32>
    %133 = arith.mulf %132, %131 : vector<8x128xf32>
    %cst_62 = arith.constant 0.707106769 : f32
    %134 = vector.broadcast %cst_62 : f32 to vector<8x128xf32>
    %135 = arith.mulf %131, %134 : vector<8x128xf32>
    %136 = math.erf %135 : vector<8x128xf32>
    %cst_63 = arith.constant 1.000000e+00 : f32
    %137 = vector.broadcast %cst_63 : f32 to vector<8x128xf32>
    %138 = arith.addf %137, %136 : vector<8x128xf32>
    %139 = arith.mulf %133, %138 : vector<8x128xf32>
    %140 = arith.truncf %139 : vector<8x128xf32> to vector<8x128xbf16>
    %c0_64 = arith.constant 0 : index
    %c0_65 = arith.constant 0 : index
    %141 = vector.load %arg14[%c0_64, %c0_65] : memref<128x32xbf16, #tpu.memory_space<vmem>>, vector<128x32xbf16>
    %cst_66 = arith.constant dense<0.000000e+00> : vector<8x32xf32>
    %142 = tpu.matmul %140, %141, %cst_66 {dimension_numbers = #tpu.dot_dimension_numbers<[1], [0], [0], [1], [0, 0, 1, 1], [], []>} : vector<8x128xbf16>, vector<128x32xbf16>, vector<8x32xf32> -> vector<8x32xf32>
    %c0_67 = arith.constant 0 : index
    %c0_68 = arith.constant 0 : index
    %143 = vector.load %arg15[%c0_67, %c0_68] : memref<1x32xf32, #tpu.memory_space<vmem>>, vector<1x32xf32>
    %144 = vector.shape_cast %143 : vector<1x32xf32> to vector<32xf32>
    %145 = vector.shape_cast %144 : vector<32xf32> to vector<1x32xf32>
    %146 = vector.broadcast %145 : vector<1x32xf32> to vector<8x32xf32>
    %147 = arith.addf %142, %146 : vector<8x32xf32>
    %148 = arith.addf %95, %147 : vector<8x32xf32>
    %c0_69 = arith.constant 0 : index
    %c0_70 = arith.constant 0 : index
    %c0_71 = arith.constant 0 : index
    %149 = vector.load %arg18[%c0_69, %c0_70, %c0_71] : memref<1x8x32xf32, #tpu.memory_space<vmem>>, vector<1x8x32xf32>
    %150 = vector.shape_cast %149 : vector<1x8x32xf32> to vector<8x32xf32>
    %151 = vector.shape_cast %148 : vector<8x32xf32> to vector<1x8x32xf32>
    tpu.vector_store %arg18[%c0_69, %c0_70, %c0_71], %151 {strides = array<i32>} : memref<1x8x32xf32, #tpu.memory_space<vmem>>, vector<1x8x32xf32>,
    return
  }
  func.func @transform_0(%arg0: i32, %arg1: i32) -> (i32, i32, i32) {
    %c0_i32 = arith.constant 0 : i32
    %c0_i32_0 = arith.constant 0 : i32
    return %arg0, %arg1, %c0_i32 : i32, i32, i32
  }
  func.func @transform_1(%arg0: i32, %arg1: i32) -> (i32, i32) {
    %c0_i32 = arith.constant 0 : i32
    %c0_i32_0 = arith.constant 0 : i32
    %c0_i32_1 = arith.constant 0 : i32
    return %c0_i32, %c0_i32_0 : i32, i32
  }
  func.func @transform_2(%arg0: i32, %arg1: i32) -> (i32, i32) {
    %c0_i32 = arith.constant 0 : i32
    %c0_i32_0 = arith.constant 0 : i32
    %c0_i32_1 = arith.constant 0 : i32
    return %c0_i32, %c0_i32_0 : i32, i32
  }
  func.func @transform_3(%arg0: i32, %arg1: i32) -> (i32, i32) {
    %c0_i32 = arith.constant 0 : i32
    %c0_i32_0 = arith.constant 0 : i32
    %c0_i32_1 = arith.constant 0 : i32
    return %c0_i32, %c0_i32_0 : i32, i32
  }
  func.func @transform_4(%arg0: i32, %arg1: i32) -> (i32, i32) {
    %c0_i32 = arith.constant 0 : i32
    %c0_i32_0 = arith.constant 0 : i32
    %c0_i32_1 = arith.constant 0 : i32
    return %c0_i32, %c0_i32_0 : i32, i32
  }
  func.func @transform_5(%arg0: i32, %arg1: i32) -> (i32, i32) {
    %c0_i32 = arith.constant 0 : i32
    %c0_i32_0 = arith.constant 0 : i32
    %c0_i32_1 = arith.constant 0 : i32
    return %c0_i32, %c0_i32_0 : i32, i32
  }
  func.func @transform_6(%arg0: i32, %arg1: i32) -> (i32, i32) {
    %c0_i32 = arith.constant 0 : i32
    %c0_i32_0 = arith.constant 0 : i32
    %c0_i32_1 = arith.constant 0 : i32
    return %c0_i32, %c0_i32_0 : i32, i32
  }
  func.func @transform_7(%arg0: i32, %arg1: i32) -> (i32, i32) {
    %c0_i32 = arith.constant 0 : i32
    %c0_i32_0 = arith.constant 0 : i32
    %c0_i32_1 = arith.constant 0 : i32
    return %c0_i32, %c0_i32_0 : i32, i32
  }
  func.func @transform_8(%arg0: i32, %arg1: i32) -> (i32, i32) {
    %c0_i32 = arith.constant 0 : i32
    %c0_i32_0 = arith.constant 0 : i32
    %c0_i32_1 = arith.constant 0 : i32
    return %c0_i32, %c0_i32_0 : i32, i32
  }
  func.func @transform_9(%arg0: i32, %arg1: i32) -> (i32, i32) {
    %c0_i32 = arith.constant 0 : i32
    %c0_i32_0 = arith.constant 0 : i32
    %c0_i32_1 = arith.constant 0 : i32
    return %c0_i32, %c0_i32_0 : i32, i32
  }
  func.func @transform_10(%arg0: i32, %arg1: i32) -> (i32, i32) {
    %c0_i32 = arith.constant 0 : i32
    %c0_i32_0 = arith.constant 0 : i32
    %c0_i32_1 = arith.constant 0 : i32
    return %c0_i32, %c0_i32_0 : i32, i32
  }
  func.func @transform_11(%arg0: i32, %arg1: i32) -> (i32, i32) {
    %c0_i32 = arith.constant 0 : i32
    %c0_i32_0 = arith.constant 0 : i32
    %c0_i32_1 = arith.constant 0 : i32
    return %c0_i32, %c0_i32_0 : i32, i32
  }
  func.func @transform_12(%arg0: i32, %arg1: i32) -> (i32, i32) {
    %c0_i32 = arith.constant 0 : i32
    %c0_i32_0 = arith.constant 0 : i32
    %c0_i32_1 = arith.constant 0 : i32
    return %c0_i32, %c0_i32_0 : i32, i32
  }
  func.func @transform_13(%arg0: i32, %arg1: i32) -> (i32, i32) {
    %c0_i32 = arith.constant 0 : i32
    %c0_i32_0 = arith.constant 0 : i32
    %c0_i32_1 = arith.constant 0 : i32
    return %c0_i32, %c0_i32_0 : i32, i32
  }
  func.func @transform_14(%arg0: i32, %arg1: i32) -> (i32, i32) {
    %c0_i32 = arith.constant 0 : i32
    %c0_i32_0 = arith.constant 0 : i32
    %c0_i32_1 = arith.constant 0 : i32
    return %c0_i32, %c0_i32_0 : i32, i32
  }
  func.func @transform_15(%arg0: i32, %arg1: i32) -> (i32, i32) {
    %c0_i32 = arith.constant 0 : i32
    %c0_i32_0 = arith.constant 0 : i32
    %c0_i32_1 = arith.constant 0 : i32
    return %c0_i32, %c0_i32_0 : i32, i32
  }
  func.func @transform_16(%arg0: i32, %arg1: i32) -> (i32, i32, i32) {
    %c0_i32 = arith.constant 0 : i32
    %c0_i32_0 = arith.constant 0 : i32
    return %arg0, %arg1, %c0_i32 : i32, i32, i32
  }
}

</mosaic_0001>

<llo_original>
// kernel: tpu_custom_call.1
$region0: #{tpu_custom_call.1}
  #allocation0 [shape = 'u32[]', space=smem, size = 0x4, offset = 0x4, fixed_abs, tag = 'smem constant byte address 0x4 - core index']
  #allocation1 [shape = 'u32[144,128]{1,0:T(1,128)}', space=vmem, size = 0x12000, scoped, tag = 'internal scratch']
  #allocation2 [shape = 'bf16[8,32]{1,0:T(8,128)(2,1)}', space=vmem, size = 0x800, scoped, tag = 'scratch operand']
  #allocation3 [shape = 'bf16[8,32]{1,0:T(8,128)(2,1)}', space=vmem, size = 0x800, scoped, tag = 'scratch operand']
  #allocation4 [shape = 'bf16[8,32]{1,0:T(8,128)(2,1)}', space=vmem, size = 0x800, scoped, tag = 'scratch operand']
  %s0 = inlined_call_operand.vmem [shape: f32[2,8,32], index: 0, kind: input, shape index: {}]
  %s1 = inlined_call_operand.vmem [shape: bf16[32,32], index: 1, kind: input, shape index: {}]
  %s2 = inlined_call_operand.vmem [shape: bf16[32,32], index: 2, kind: input, shape index: {}]
  %s3 = inlined_call_operand.vmem [shape: bf16[32,32], index: 3, kind: input, shape index: {}]
  %s4 = inlined_call_operand.vmem [shape: bf16[32,32], index: 4, kind: input, shape index: {}]
  %s5 = inlined_call_operand.vmem [shape: f32[1,32], index: 5, kind: input, shape index: {}]
  %s6 = inlined_call_operand.vmem [shape: f32[1,32], index: 6, kind: input, shape index: {}]
  %s7 = inlined_call_operand.hbm [shape: f32[1,32], index: 7, kind: input, shape index: {}]
  %s8 = inlined_call_operand.hbm [shape: f32[1,32], index: 8, kind: input, shape index: {}]
  %s9 = inlined_call_operand.hbm [shape: f32[1,32], index: 9, kind: input, shape index: {}]
  %s10 = inlined_call_operand.vmem [shape: bf16[32,128], index: 10, kind: input, shape index: {}]
  %s11 = inlined_call_operand.vmem [shape: f32[1,128], index: 11, kind: input, shape index: {}]
  %s12 = inlined_call_operand.vmem [shape: bf16[128,32], index: 12, kind: input, shape index: {}]
  %s13 = inlined_call_operand.vmem [shape: f32[1,32], index: 13, kind: input, shape index: {}]
  %s14 = inlined_call_operand.vmem [shape: f32[1,32], index: 14, kind: input, shape index: {}]
  %s15 = inlined_call_operand.vmem [shape: f32[1,32], index: 15, kind: input, shape index: {}]
  %s16 = inlined_call_operand.hbm [shape: f32[2,8,32], index: 16, kind: output, shape index: {}]
  %s17 = sld [smem:[#allocation0]]
  $region116: #{tpu_custom_call.1} parent=0
    _
  %s19 = ssub.s32 1, %s17
  %s20 = scalar_select 0, %s19, %s17
  $region1: #{tpu_custom_call.1} parent=0
    #allocation5 [shape = 'u8[512]{0}', space=vmem, size = 0x400, scoped, tag = 'input window, operand 7, single buffered']
    #allocation6 [shape = 's32[2]{0}', space=sflag, size = 0x8, scoped, tag = 'scoped memory for tpu_custom_call.1']
    #allocation7 [shape = 's32[2]{0}', space=sflag, size = 0x8, scoped, tag = 'scoped memory for tpu_custom_call.1']
    #allocation8 [shape = 'u8[512]{0}', space=vmem, size = 0x400, scoped, tag = 'input window, operand 8, single buffered']
    #allocation9 [shape = 's32[1]{0}', space=sflag, size = 0x4, scoped, tag = 'scoped memory for tpu_custom_call.1']
    #allocation10 [shape = 'u8[512]{0}', space=vmem, size = 0x400, scoped, tag = 'input window, operand 9, single buffered']
    #allocation11 [shape = 'u8[8192]{0}', space=vmem, size = 0x2000, scoped, tag = 'output window, operand 0']
    %21 = vsyncpa [#allocation6], 0
    %22 = vsyncpa [#allocation9], 0
    %23 = vsyncpa [#allocation7], 0
    %s24 = scalar_lea.sflag [#allocation7], 1
    %25 = vsyncpa %s24, 0
    loop: start=0, step=1, limit=4
    $region2: #{tpu_custom_call.1} parent=1 // loop_pre_header
      _
    $region3: #{tpu_custom_call.1} parent=1 // loop_header
      %s27 = sphi 0, %s31
      %p28 = scmp.ge.s32.totalorder %s27, 4
      %s34 = sphi 0, %s46
      %s35 = sphi 0, %s42
      %s36 = sphi 0, %s34
      %s37 = sphi 0, %s35
      %s38 = sphi 0, %s36
      %s39 = sphi 0, %s37
      %s51 = sphi 0, %s53
      %s54 = sphi 0, %s51
      %s55 = sphi 0, %s54
      %s71 = sphi 0, %s55
      %s75 = sphi 0, %s75
      %s77 = sphi 0, %s75
      %s78 = sphi 0, %s77
      %s92 = sphi 0, %s78
      %s96 = sphi 0, %s96
      %s98 = sphi 0, %s96
      %s99 = sphi 0, %s98
      %s113 = sphi 0, %s99
      %s117 = sphi 0, %s117
      %s119 = sphi 0, %s117
      %s120 = sphi 0, %s119
      %s134 = sphi 0, %s120
      %s138 = sphi 0, %s138
      %s140 = sphi 0, %s138
      %s141 = sphi 0, %s140
      %s155 = sphi 0, %s141
      %s159 = sphi 0, %s159
      %s161 = sphi 0, %s159
      %s162 = sphi 0, %s161
      %s176 = sphi 0, %s162
      %s180 = sphi 0, %s180
      %s182 = sphi 0, %s180
      %s183 = sphi 0, %s182
      %s197 = sphi 0, %s183
      %s201 = sphi 0, %s201
      %s203 = sphi 0, %s201
      %s204 = sphi 0, %s203
      %s218 = sphi 0, %s204
      %s222 = sphi 0, %s222
      %s224 = sphi 0, %s222
      %s225 = sphi 0, %s224
      %s239 = sphi 0, %s225
      %s243 = sphi 0, %s243
      %s245 = sphi 0, %s243
      %s246 = sphi 0, %s245
      %s260 = sphi 0, %s246
      %s264 = sphi 0, %s264
      %s266 = sphi 0, %s264
      %s267 = sphi 0, %s266
      %s281 = sphi 0, %s267
      %s285 = sphi 0, %s285
      %s287 = sphi 0, %s285
      %s288 = sphi 0, %s287
      %s302 = sphi 0, %s288
      %s306 = sphi 0, %s306
      %s308 = sphi 0, %s306
      %s309 = sphi 0, %s308
      %s323 = sphi 0, %s309
      %s327 = sphi 0, %s327
      %s329 = sphi 0, %s327
      %s330 = sphi 0, %s329
      %s344 = sphi 0, %s330
      %s348 = sphi 0, %s348
      %s350 = sphi 0, %s348
      %s351 = sphi 0, %s350
      %s365 = sphi 0, %s351
      %s369 = sphi 0, %s369
      %s371 = sphi 0, %s369
      %s372 = sphi 0, %s371
      %s386 = sphi 0, %s372
      %s394 = sphi 0, %s396
      %s397 = sphi 0, %s394
      %s398 = sphi 0, %s397
      %s414 = sphi 0, %s398
    $region4: #{tpu_custom_call.1} parent=1 // loop_header_branch
      %30 = sbr.rel (%p28) target = $region8
    $region5: #{tpu_custom_call.1} parent=1 // loop_body
      %s32 = ssub.s32 %s27, 1
      %s33 = ssub.s32 %s27, 2
      %s40 = sadd.s32 1, %s35
      %p41 = scmp.ge.s32.totalorder %s40, 1
      %s42 = scalar_select %p41, 0, %s40
      %s43 = sadd.s32 1, %s34
      %s44 = scalar_select %p41, %s43, %s34
      %p45 = scmp.ge.s32.totalorder %s44, 2
      %s46 = scalar_select %p45, 0, %s44
      %s47 = ssub.s32 %s34, %s46
      %s48 = ssub.s32 %s35, %s42
      %s49 = sor.u32 %s47, %s48
      %p50 = scmp.eq.s32.totalorder %s49, 0
      %s52 = sadd.s32 %s51, 1
      %s53 = scalar_select %p50, %s51, %s52
      %p56 = pneg %p50
      %p57 = scmp.eq.s32.totalorder %s27, 1
      %p58 = por %p56, %p57
      %p59 = scmp.ne.s32.totalorder %s51, %s54
      %p60 = scmp.eq.s32.totalorder %s27, 0
      %p61 = por %p59, %p60
      %p62 = scmp.ne.s32.totalorder %s51, %s54
      %p63 = scmp.eq.s32.totalorder %s32, 1
      %p64 = por %p62, %p63
      %p65 = scmp.ne.s32.totalorder %s54, %s55
      %p66 = scmp.eq.s32.totalorder %s32, 0
      %p67 = por %p65, %p66
      %p68 = scmp.ne.s32.totalorder %s54, %s55
      %p69 = scmp.eq.s32.totalorder %s33, 1
      %p70 = por %p68, %p69
      %p72 = scmp.ne.s32.totalorder %s55, %s71
      %p73 = scmp.eq.s32.totalorder %s33, 0
      %p74 = por %p72, %p73
      %s76 = sadd.s32 %s75, 1
      %p79 = scmp.eq.s32.totalorder %s27, 1
      %p80 = scmp.ne.s32.totalorder %s75, %s77
      %p81 = scmp.eq.s32.totalorder %s27, 0
      %p82 = por %p80, %p81
      %p83 = scmp.ne.s32.totalorder %s75, %s77
      %p84 = scmp.eq.s32.totalorder %s32, 1
      %p85 = por %p83, %p84
      %p86 = scmp.ne.s32.totalorder %s77, %s78
      %p87 = scmp.eq.s32.totalorder %s32, 0
      %p88 = por %p86, %p87
      %p89 = scmp.ne.s32.totalorder %s77, %s78
      %p90 = scmp.eq.s32.totalorder %s33, 1
      %p91 = por %p89, %p90
      %p93 = scmp.ne.s32.totalorder %s78, %s92
      %p94 = scmp.eq.s32.totalorder %s33, 0
      %p95 = por %p93, %p94
      %s97 = sadd.s32 %s96, 1
      %p100 = scmp.eq.s32.totalorder %s27, 1
      %p101 = scmp.ne.s32.totalorder %s96, %s98
      %p102 = scmp.eq.s32.totalorder %s27, 0
      %p103 = por %p101, %p102
      %p104 = scmp.ne.s32.totalorder %s96, %s98
      %p105 = scmp.eq.s32.totalorder %s32, 1
      %p106 = por %p104, %p105
      %p107 = scmp.ne.s32.totalorder %s98, %s99
      %p108 = scmp.eq.s32.totalorder %s32, 0
      %p109 = por %p107, %p108
      %p110 = scmp.ne.s32.totalorder %s98, %s99
      %p111 = scmp.eq.s32.totalorder %s33, 1
      %p112 = por %p110, %p111
      %p114 = scmp.ne.s32.totalorder %s99, %s113
      %p115 = scmp.eq.s32.totalorder %s33, 0
      %p116 = por %p114, %p115
      %s118 = sadd.s32 %s117, 1
      %p121 = scmp.eq.s32.totalorder %s27, 1
      %p122 = scmp.ne.s32.totalorder %s117, %s119
      %p123 = scmp.eq.s32.totalorder %s27, 0
      %p124 = por %p122, %p123
      %p125 = scmp.ne.s32.totalorder %s117, %s119
      %p126 = scmp.eq.s32.totalorder %s32, 1
      %p127 = por %p125, %p126
      %p128 = scmp.ne.s32.totalorder %s119, %s120
      %p129 = scmp.eq.s32.totalorder %s32, 0
      %p130 = por %p128, %p129
      %p131 = scmp.ne.s32.totalorder %s119, %s120
      %p132 = scmp.eq.s32.totalorder %s33, 1
      %p133 = por %p131, %p132
      %p135 = scmp.ne.s32.totalorder %s120, %s134
      %p136 = scmp.eq.s32.totalorder %s33, 0
      %p137 = por %p135, %p136
      %s139 = sadd.s32 %s138, 1
      %p142 = scmp.eq.s32.totalorder %s27, 1
      %p143 = scmp.ne.s32.totalorder %s138, %s140
      %p144 = scmp.eq.s32.totalorder %s27, 0
      %p145 = por %p143, %p144
      %p146 = scmp.ne.s32.totalorder %s138, %s140
      %p147 = scmp.eq.s32.totalorder %s32, 1
      %p148 = por %p146, %p147
      %p149 = scmp.ne.s32.totalorder %s140, %s141
      %p150 = scmp.eq.s32.totalorder %s32, 0
      %p151 = por %p149, %p150
      %p152 = scmp.ne.s32.totalorder %s140, %s141
      %p153 = scmp.eq.s32.totalorder %s33, 1
      %p154 = por %p152, %p153
      %p156 = scmp.ne.s32.totalorder %s141, %s155
      %p157 = scmp.eq.s32.totalorder %s33, 0
      %p158 = por %p156, %p157
      %s160 = sadd.s32 %s159, 1
      %p163 = scmp.eq.s32.totalorder %s27, 1
      %p164 = scmp.ne.s32.totalorder %s159, %s161
      %p165 = scmp.eq.s32.totalorder %s27, 0
      %p166 = por %p164, %p165
      %p167 = scmp.ne.s32.totalorder %s159, %s161
      %p168 = scmp.eq.s32.totalorder %s32, 1
      %p169 = por %p167, %p168
      %p170 = scmp.ne.s32.totalorder %s161, %s162
      %p171 = scmp.eq.s32.totalorder %s32, 0
      %p172 = por %p170, %p171
      %p173 = scmp.ne.s32.totalorder %s161, %s162
      %p174 = scmp.eq.s32.totalorder %s33, 1
      %p175 = por %p173, %p174
      %p177 = scmp.ne.s32.totalorder %s162, %s176
      %p178 = scmp.eq.s32.totalorder %s33, 0
      %p179 = por %p177, %p178
      %s181 = sadd.s32 %s180, 1
      %p184 = scmp.eq.s32.totalorder %s27, 1
      %p185 = scmp.ne.s32.totalorder %s180, %s182
      %p186 = scmp.eq.s32.totalorder %s27, 0
      %p187 = por %p185, %p186
      %p188 = scmp.ne.s32.totalorder %s180, %s182
      %p189 = scmp.eq.s32.totalorder %s32, 1
      %p190 = por %p188, %p189
      %p191 = scmp.ne.s32.totalorder %s182, %s183
      %p192 = scmp.eq.s32.totalorder %s32, 0
      %p193 = por %p191, %p192
      %p194 = scmp.ne.s32.totalorder %s182, %s183
      %p195 = scmp.eq.s32.totalorder %s33, 1
      %p196 = por %p194, %p195
      %p198 = scmp.ne.s32.totalorder %s183, %s197
      %p199 = scmp.eq.s32.totalorder %s33, 0
      %p200 = por %p198, %p199
      %s202 = sadd.s32 %s201, 1
      %p205 = scmp.eq.s32.totalorder %s27, 1
      %p206 = scmp.ne.s32.totalorder %s201, %s203
      %p207 = scmp.eq.s32.totalorder %s27, 0
      %p208 = por %p206, %p207
      %p209 = scmp.ne.s32.totalorder %s201, %s203
      %p210 = scmp.eq.s32.totalorder %s32, 1
      %p211 = por %p209, %p210
      %p212 = scmp.ne.s32.totalorder %s203, %s204
      %p213 = scmp.eq.s32.totalorder %s32, 0
      %p214 = por %p212, %p213
      %p215 = scmp.ne.s32.totalorder %s203, %s204
      %p216 = scmp.eq.s32.totalorder %s33, 1
      %p217 = por %p215, %p216
      %p219 = scmp.ne.s32.totalorder %s204, %s218
      %p220 = scmp.eq.s32.totalorder %s33, 0
      %p221 = por %p219, %p220
      %s223 = sadd.s32 %s222, 1
      %p226 = scmp.eq.s32.totalorder %s27, 1
      %p227 = scmp.ne.s32.totalorder %s222, %s224
      %p228 = scmp.eq.s32.totalorder %s27, 0
      %p229 = por %p227, %p228
      %p230 = scmp.ne.s32.totalorder %s222, %s224
      %p231 = scmp.eq.s32.totalorder %s32, 1
      %p232 = por %p230, %p231
      %p233 = scmp.ne.s32.totalorder %s224, %s225
      %p234 = scmp.eq.s32.totalorder %s32, 0
      %p235 = por %p233, %p234
      %p236 = scmp.ne.s32.totalorder %s224, %s225
      %p237 = scmp.eq.s32.totalorder %s33, 1
      %p238 = por %p236, %p237
      %p240 = scmp.ne.s32.totalorder %s225, %s239
      %p241 = scmp.eq.s32.totalorder %s33, 0
      %p242 = por %p240, %p241
      %s244 = sadd.s32 %s243, 1
      %p247 = scmp.eq.s32.totalorder %s27, 1
      %p248 = scmp.ne.s32.totalorder %s243, %s245
      %p249 = scmp.eq.s32.totalorder %s27, 0
      %p250 = por %p248, %p249
      %p251 = scmp.ne.s32.totalorder %s243, %s245
      %p252 = scmp.eq.s32.totalorder %s32, 1
      %p253 = por %p251, %p252
      %p254 = scmp.ne.s32.totalorder %s245, %s246
      %p255 = scmp.eq.s32.totalorder %s32, 0
      %p256 = por %p254, %p255
      %p257 = scmp.ne.s32.totalorder %s245, %s246
      %p258 = scmp.eq.s32.totalorder %s33, 1
      %p259 = por %p257, %p258
      %p261 = scmp.ne.s32.totalorder %s246, %s260
      %p262 = scmp.eq.s32.totalorder %s33, 0
      %p263 = por %p261, %p262
      %s265 = sadd.s32 %s264, 1
      %p268 = scmp.eq.s32.totalorder %s27, 1
      %p269 = scmp.ne.s32.totalorder %s264, %s266
      %p270 = scmp.eq.s32.totalorder %s27, 0
      %p271 = por %p269, %p270
      %p272 = scmp.ne.s32.totalorder %s264, %s266
      %p273 = scmp.eq.s32.totalorder %s32, 1
      %p274 = por %p272, %p273
      %p275 = scmp.ne.s32.totalorder %s266, %s267
      %p276 = scmp.eq.s32.totalorder %s32, 0
      %p277 = por %p275, %p276
      %p278 = scmp.ne.s32.totalorder %s266, %s267
      %p279 = scmp.eq.s32.totalorder %s33, 1
      %p280 = por %p278, %p279
      %p282 = scmp.ne.s32.totalorder %s267, %s281
      %p283 = scmp.eq.s32.totalorder %s33, 0
      %p284 = por %p282, %p283
      %s286 = sadd.s32 %s285, 1
      %p289 = scmp.eq.s32.totalorder %s27, 1
      %p290 = scmp.ne.s32.totalorder %s285, %s287
      %p291 = scmp.eq.s32.totalorder %s27, 0
      %p292 = por %p290, %p291
      %p293 = scmp.ne.s32.totalorder %s285, %s287
      %p294 = scmp.eq.s32.totalorder %s32, 1
      %p295 = por %p293, %p294
      %p296 = scmp.ne.s32.totalorder %s287, %s288
      %p297 = scmp.eq.s32.totalorder %s32, 0
      %p298 = por %p296, %p297
      %p299 = scmp.ne.s32.totalorder %s287, %s288
      %p300 = scmp.eq.s32.totalorder %s33, 1
      %p301 = por %p299, %p300
      %p303 = scmp.ne.s32.totalorder %s288, %s302
      %p304 = scmp.eq.s32.totalorder %s33, 0
      %p305 = por %p303, %p304
      %s307 = sadd.s32 %s306, 1
      %p310 = scmp.eq.s32.totalorder %s27, 1
      %p311 = scmp.ne.s32.totalorder %s306, %s308
      %p312 = scmp.eq.s32.totalorder %s27, 0
      %p313 = por %p311, %p312
      %p314 = scmp.ne.s32.totalorder %s306, %s308
      %p315 = scmp.eq.s32.totalorder %s32, 1
      %p316 = por %p314, %p315
      %p317 = scmp.ne.s32.totalorder %s308, %s309
      %p318 = scmp.eq.s32.totalorder %s32, 0
      %p319 = por %p317, %p318
      %p320 = scmp.ne.s32.totalorder %s308, %s309
      %p321 = scmp.eq.s32.totalorder %s33, 1
      %p322 = por %p320, %p321
      %p324 = scmp.ne.s32.totalorder %s309, %s323
      %p325 = scmp.eq.s32.totalorder %s33, 0
      %p326 = por %p324, %p325
      %s328 = sadd.s32 %s327, 1
      %p331 = scmp.eq.s32.totalorder %s27, 1
      %p332 = scmp.ne.s32.totalorder %s327, %s329
      %p333 = scmp.eq.s32.totalorder %s27, 0
      %p334 = por %p332, %p333
      %p335 = scmp.ne.s32.totalorder %s327, %s329
      %p336 = scmp.eq.s32.totalorder %s32, 1
      %p337 = por %p335, %p336
      %p338 = scmp.ne.s32.totalorder %s329, %s330
      %p339 = scmp.eq.s32.totalorder %s32, 0
      %p340 = por %p338, %p339
      %p341 = scmp.ne.s32.totalorder %s329, %s330
      %p342 = scmp.eq.s32.totalorder %s33, 1
      %p343 = por %p341, %p342
      %p345 = scmp.ne.s32.totalorder %s330, %s344
      %p346 = scmp.eq.s32.totalorder %s33, 0
      %p347 = por %p345, %p346
      %s349 = sadd.s32 %s348, 1
      %p352 = scmp.eq.s32.totalorder %s27, 1
      %p353 = scmp.ne.s32.totalorder %s348, %s350
      %p354 = scmp.eq.s32.totalorder %s27, 0
      %p355 = por %p353, %p354
      %p356 = scmp.ne.s32.totalorder %s348, %s350
      %p357 = scmp.eq.s32.totalorder %s32, 1
      %p358 = por %p356, %p357
      %p359 = scmp.ne.s32.totalorder %s350, %s351
      %p360 = scmp.eq.s32.totalorder %s32, 0
      %p361 = por %p359, %p360
      %p362 = scmp.ne.s32.totalorder %s350, %s351
      %p363 = scmp.eq.s32.totalorder %s33, 1
      %p364 = por %p362, %p363
      %p366 = scmp.ne.s32.totalorder %s351, %s365
      %p367 = scmp.eq.s32.totalorder %s33, 0
      %p368 = por %p366, %p367
      %s370 = sadd.s32 %s369, 1
      %p373 = scmp.eq.s32.totalorder %s27, 1
      %p374 = scmp.ne.s32.totalorder %s369, %s371
      %p375 = scmp.eq.s32.totalorder %s27, 0
      %p376 = por %p374, %p375
      %p377 = scmp.ne.s32.totalorder %s369, %s371
      %p378 = scmp.eq.s32.totalorder %s32, 1
      %p379 = por %p377, %p378
      %p380 = scmp.ne.s32.totalorder %s371, %s372
      %p381 = scmp.eq.s32.totalorder %s32, 0
      %p382 = por %p380, %p381
      %p383 = scmp.ne.s32.totalorder %s371, %s372
      %p384 = scmp.eq.s32.totalorder %s33, 1
      %p385 = por %p383, %p384
      %p387 = scmp.ne.s32.totalorder %s372, %s386
      %p388 = scmp.eq.s32.totalorder %s33, 0
      %p389 = por %p387, %p388
      %s390 = ssub.s32 %s34, %s46
      %s391 = ssub.s32 %s35, %s42
      %s392 = sor.u32 %s390, %s391
      %p393 = scmp.eq.s32.totalorder %s392, 0
      %s395 = sadd.s32 %s394, 1
      %s396 = scalar_select %p393, %s394, %s395
      %p399 = pneg %p393
      %p400 = scmp.eq.s32.totalorder %s27, 1
      %p401 = por %p399, %p400
      %p402 = scmp.ne.s32.totalorder %s394, %s397
      %p403 = scmp.eq.s32.totalorder %s27, 0
      %p404 = por %p402, %p403
      %p405 = scmp.ne.s32.totalorder %s394, %s397
      %p406 = scmp.eq.s32.totalorder %s32, 1
      %p407 = por %p405, %p406
      %p408 = scmp.ne.s32.totalorder %s397, %s398
      %p409 = scmp.eq.s32.totalorder %s32, 0
      %p410 = por %p408, %p409
      %p411 = scmp.ne.s32.totalorder %s397, %s398
      %p412 = scmp.eq.s32.totalorder %s33, 1
      %p413 = por %p411, %p412
      %p415 = scmp.ne.s32.totalorder %s398, %s414
      %p416 = scmp.eq.s32.totalorder %s33, 0
      %p417 = por %p415, %p416
      %p418 = scmp.le.s32.totalorder 1, %s27
      %p419 = scmp.lt.s32.totalorder %s27, 3
      %p420 = pnand %p418, %p419
      %p421 = pneg %p420
      // Predicated region
      $region9: #{tpu_custom_call.1} parent=5 // pred_check
        _
      $region10: #{tpu_custom_call.1} parent=5 // pred_check_branch
        %423 = sbr.rel (%p420) target = $region12
      $region11: #{tpu_custom_call.1} parent=5 // pred_region
        %s424 = ssub.s32 %s27, 1
        // Predicated region
        $region13: #{tpu_custom_call.1} parent=11 // pred_check
          %p425 = pneg %p88
        $region14: #{tpu_custom_call.1} parent=11 // pred_check_branch
          %427 = sbr.rel (%p425) target = $region16
        $region15: #{tpu_custom_call.1} parent=11 // pred_region
          _
        $region16: #{tpu_custom_call.1} parent=11 // pred_fallthru
          _
        // Predicated region
        $region17: #{tpu_custom_call.1} parent=11 // pred_check
          %p428 = pneg %p109
        $region18: #{tpu_custom_call.1} parent=11 // pred_check_branch
          %430 = sbr.rel (%p428) target = $region20
        $region19: #{tpu_custom_call.1} parent=11 // pred_region
          _
        $region20: #{tpu_custom_call.1} parent=11 // pred_fallthru
          _
        // Predicated region
        $region21: #{tpu_custom_call.1} parent=11 // pred_check
          %p431 = pneg %p130
        $region22: #{tpu_custom_call.1} parent=11 // pred_check_branch
          %433 = sbr.rel (%p431) target = $region24
        $region23: #{tpu_custom_call.1} parent=11 // pred_region
          _
        $region24: #{tpu_custom_call.1} parent=11 // pred_fallthru
          _
        // Predicated region
        $region25: #{tpu_custom_call.1} parent=11 // pred_check
          %p434 = pneg %p151
        $region26: #{tpu_custom_call.1} parent=11 // pred_check_branch
          %436 = sbr.rel (%p434) target = $region28
        $region27: #{tpu_custom_call.1} parent=11 // pred_region
          _
        $region28: #{tpu_custom_call.1} parent=11 // pred_fallthru
          _
        // Predicated region
        $region29: #{tpu_custom_call.1} parent=11 // pred_check
          %p437 = pneg %p172
        $region30: #{tpu_custom_call.1} parent=11 // pred_check_branch
          %439 = sbr.rel (%p437) target = $region32
        $region31: #{tpu_custom_call.1} parent=11 // pred_region
          _
        $region32: #{tpu_custom_call.1} parent=11 // pred_fallthru
          _
        // Predicated region
        $region33: #{tpu_custom_call.1} parent=11 // pred_check
          %p440 = pneg %p193
        $region34: #{tpu_custom_call.1} parent=11 // pred_check_branch
          %442 = sbr.rel (%p440) target = $region36
        $region35: #{tpu_custom_call.1} parent=11 // pred_region
          _
        $region36: #{tpu_custom_call.1} parent=11 // pred_fallthru
          _
        // Predicated region
        $region37: #{tpu_custom_call.1} parent=11 // pred_check
          %p443 = pneg %p214
        $region38: #{tpu_custom_call.1} parent=11 // pred_check_branch
          %445 = sbr.rel (%p443) target = $region40
        $region39: #{tpu_custom_call.1} parent=11 // pred_region
          %s447 = ssub.s32 16, 16
          %448 = vsyncadd [#allocation6], %s447
          %s450 = sshll.u32 [#allocation5], 4
          %s451 = int_to_ptr.vmem [resolvable:$true] %s450
          %453 = dma.hbm_to_vmem [thread:$0]  %s7, 16, %s451, [#allocation6]
        $region40: #{tpu_custom_call.1} parent=11 // pred_fallthru
          _
        // Predicated region
        $region41: #{tpu_custom_call.1} parent=11 // pred_check
          %p454 = pneg %p235
        $region42: #{tpu_custom_call.1} parent=11 // pred_check_branch
          %456 = sbr.rel (%p454) target = $region44
        $region43: #{tpu_custom_call.1} parent=11 // pred_region
          %s458 = ssub.s32 16, 16
          %459 = vsyncadd [#allocation9], %s458
          %s461 = sshll.u32 [#allocation8], 4
          %s462 = int_to_ptr.vmem [resolvable:$true] %s461
          %464 = dma.hbm_to_vmem [thread:$0]  %s8, 16, %s462, [#allocation9]
        $region44: #{tpu_custom_call.1} parent=11 // pred_fallthru
          _
        // Predicated region
        $region45: #{tpu_custom_call.1} parent=11 // pred_check
          %p465 = pneg %p256
        $region46: #{tpu_custom_call.1} parent=11 // pred_check_branch
          %467 = sbr.rel (%p465) target = $region48
        $region47: #{tpu_custom_call.1} parent=11 // pred_region
          %s469 = ssub.s32 16, 16
          %470 = vsyncadd [#allocation9], %s469
          %s472 = sshll.u32 [#allocation10], 4
          %s473 = int_to_ptr.vmem [resolvable:$true] %s472
          %475 = dma.hbm_to_vmem [thread:$0]  %s9, 16, %s473, [#allocation9]
        $region48: #{tpu_custom_call.1} parent=11 // pred_fallthru
          _
        // Predicated region
        $region49: #{tpu_custom_call.1} parent=11 // pred_check
          %p476 = pneg %p277
        $region50: #{tpu_custom_call.1} parent=11 // pred_check_branch
          %478 = sbr.rel (%p476) target = $region52
        $region51: #{tpu_custom_call.1} parent=11 // pred_region
          _
        $region52: #{tpu_custom_call.1} parent=11 // pred_fallthru
          _
        // Predicated region
        $region53: #{tpu_custom_call.1} parent=11 // pred_check
          %p479 = pneg %p298
        $region54: #{tpu_custom_call.1} parent=11 // pred_check_branch
          %481 = sbr.rel (%p479) target = $region56
        $region55: #{tpu_custom_call.1} parent=11 // pred_region
          _
        $region56: #{tpu_custom_call.1} parent=11 // pred_fallthru
          _
        // Predicated region
        $region57: #{tpu_custom_call.1} parent=11 // pred_check
          %p482 = pneg %p319
        $region58: #{tpu_custom_call.1} parent=11 // pred_check_branch
          %484 = sbr.rel (%p482) target = $region60
        $region59: #{tpu_custom_call.1} parent=11 // pred_region
          _
        $region60: #{tpu_custom_call.1} parent=11 // pred_fallthru
          _
        // Predicated region
        $region61: #{tpu_custom_call.1} parent=11 // pred_check
          %p485 = pneg %p340
        $region62: #{tpu_custom_call.1} parent=11 // pred_check_branch
          %487 = sbr.rel (%p485) target = $region64
        $region63: #{tpu_custom_call.1} parent=11 // pred_region
          _
        $region64: #{tpu_custom_call.1} parent=11 // pred_fallthru
          _
        // Predicated region
        $region65: #{tpu_custom_call.1} parent=11 // pred_check
          %p488 = pneg %p361
        $region66: #{tpu_custom_call.1} parent=11 // pred_check_branch
          %490 = sbr.rel (%p488) target = $region68
        $region67: #{tpu_custom_call.1} parent=11 // pred_region
          _
        $region68: #{tpu_custom_call.1} parent=11 // pred_fallthru
          _
        // Predicated region
        $region69: #{tpu_custom_call.1} parent=11 // pred_check
          %p491 = pneg %p382
        $region70: #{tpu_custom_call.1} parent=11 // pred_check_branch
          %493 = sbr.rel (%p491) target = $region72
        $region71: #{tpu_custom_call.1} parent=11 // pred_region
          _
        $region72: #{tpu_custom_call.1} parent=11 // pred_fallthru
          _
      $region12: #{tpu_custom_call.1} parent=5 // pred_fallthru
        _
      %p494 = scmp.lt.s32.totalorder %s27, 2
      // Predicated region
      $region73: #{tpu_custom_call.1} parent=5 // pred_check
        %p495 = pneg %p494
      $region74: #{tpu_custom_call.1} parent=5 // pred_check_branch
        %497 = sbr.rel (%p495) target = $region76
      $region75: #{tpu_custom_call.1} parent=5 // pred_region
        // Predicated region
        $region77: #{tpu_custom_call.1} parent=75 // pred_check
          %p498 = pneg %p61
        $region78: #{tpu_custom_call.1} parent=75 // pred_check_branch
          %500 = sbr.rel (%p498) target = $region80
        $region79: #{tpu_custom_call.1} parent=75 // pred_region
          %p501 = scmp.lt.s32.totalorder %s34, 1
          %s502 = scalar_select %p501, %s34, 1
          %p503 = scmp.lt.s32.totalorder %s35, 0
          %s504 = scalar_select %p503, %s35, 0
          %s505 = sadd.s32 %s504, %s502
          %s506 = smul.addr %s505, 8
          %s507 = scalar_lea.vmem %s0, %s506
        $region80: #{tpu_custom_call.1} parent=75 // pred_fallthru
          _
      $region76: #{tpu_custom_call.1} parent=5 // pred_fallthru
        _
      %p508 = scmp.le.s32.totalorder 1, %s27
      %p509 = scmp.lt.s32.totalorder %s27, 3
      %p510 = pnand %p508, %p509
      %p511 = pneg %p510
      // Predicated region
      $region81: #{tpu_custom_call.1} parent=5 // pred_check
        _
      $region82: #{tpu_custom_call.1} parent=5 // pred_check_branch
        %513 = sbr.rel (%p510) target = $region84
      $region83: #{tpu_custom_call.1} parent=5 // pred_region
        %s514 = ssub.s32 %s27, 1
        // Predicated region
        $region85: #{tpu_custom_call.1} parent=83 // pred_check
          %p515 = pneg %p214
        $region86: #{tpu_custom_call.1} parent=83 // pred_check_branch
          %517 = sbr.rel (%p515) target = $region88
        $region87: #{tpu_custom_call.1} parent=83 // pred_region
          %518 = dma.done [#allocation6], 16
        $region88: #{tpu_custom_call.1} parent=83 // pred_fallthru
          _
        // Predicated region
        $region89: #{tpu_custom_call.1} parent=83 // pred_check
          %p519 = pneg %p235
        $region90: #{tpu_custom_call.1} parent=83 // pred_check_branch
          %521 = sbr.rel (%p519) target = $region92
        $region91: #{tpu_custom_call.1} parent=83 // pred_region
          %522 = dma.done [#allocation9], 16
        $region92: #{tpu_custom_call.1} parent=83 // pred_fallthru
          _
        // Predicated region
        $region93: #{tpu_custom_call.1} parent=83 // pred_check
          %p523 = pneg %p256
        $region94: #{tpu_custom_call.1} parent=83 // pred_check_branch
          %525 = sbr.rel (%p523) target = $region96
        $region95: #{tpu_custom_call.1} parent=83 // pred_region
          %526 = dma.done [#allocation9], 16
        $region96: #{tpu_custom_call.1} parent=83 // pred_fallthru
          _
        %p527 = scmp.lt.s32.totalorder %s36, 1
        %s528 = scalar_select %p527, %s36, 1
        %p529 = scmp.lt.s32.totalorder %s37, 0
        %s530 = scalar_select %p529, %s37, 0
        %s531 = sadd.s32 %s530, %s528
        %s532 = smul.addr %s531, 8
        %s533 = scalar_lea.vmem %s0, %s532
        %p534 = pneg %p67
        %p535 = pneg %p64
        %p536 = pneg %p88
        %p537 = pneg %p85
        %p538 = pneg %p109
        %p539 = pneg %p106
        %p540 = pneg %p130
        %p541 = pneg %p127
        %p542 = pneg %p151
        %p543 = pneg %p148
        %p544 = pneg %p172
        %p545 = pneg %p169
        %p546 = pneg %p193
        %p547 = pneg %p190
        %p548 = pneg %p214
        %p549 = pneg %p211
        %p550 = pneg %p235
        %p551 = pneg %p232
        %p552 = pneg %p256
        %p553 = pneg %p253
        %p554 = pneg %p277
        %p555 = pneg %p274
        %p556 = pneg %p298
        %p557 = pneg %p295
        %p558 = pneg %p319
        %p559 = pneg %p316
        %p560 = pneg %p340
        %p561 = pneg %p337
        %p562 = pneg %p361
        %p563 = pneg %p358
        %p564 = pneg %p382
        %p565 = pneg %p379
        %p566 = pneg %p410
        %p567 = pneg %p407
        %s568 = sand.u32 %s397, 1
        %s569 = scalar_lea.sflag [#allocation7], %s568
        %s570 = sand.u32 %s397, 1
        %s571 = smul.addr %s570, 8
        %s572 = scalar_lea.vmem [#allocation11], %s571
        %p573 = scmp.lt.s32.totalorder %s36, 1
        %s574 = scalar_select %p573, %s36, 1
        %p575 = scmp.lt.s32.totalorder %s37, 0
        %s576 = scalar_select %p575, %s37, 0
        %s577 = sadd.s32 %s576, %s574
        %s578 = smul.addr %s577, 8
        %s579 = scalar_lea.vmem %s0, %s578
        %v581 = vld [vmem:[%s579] sm:$0xff]
        %v582 = vld [vmem:[%s6] sm:$0x1]
        %v583 = vld [vmem:[#allocation5] sm:$0x1]
        %vm584 = vcmask 261120
        %v585 = vsel %vm584, %v581, 0.0
        %586 = vadd.xlane.f32.xlu0 %v585
        %v587 = vpop.xlane.xlu0 %586
        %v588 = vrcp.pop 32.0
        %v589 = vmul.f32 %v587, %v588
        %v590 = vsub.f32 %v581, %v589
        %v591 = vmul.f32 %v590, %v590
        %v592 = vsel %vm584, %v591, 0.0
        %593 = vadd.xlane.f32.xlu0 %v592
        %v594 = vpop.xlane.xlu0 %593
        %v595 = vmul.f32 %v594, %v588
        %v596 = vadd.f32 %v595, 1e-05
        %v597 = vrsqrt.pop %v596
        %v598 = vmul.f32 %v590, %v597
        %v600 = vlaneseq
        %v601 = vshrl.u32 %v600, 7
        %v602 = vsub.s32 0, %v601
        %v603 = vrot.slane %v582, %v602
        %v605 = vmul.f32 %v598, %v603
        %v607 = vlaneseq
        %v608 = vshrl.u32 %v607, 7
        %v609 = vsub.s32 0, %v608
        %v610 = vrot.slane %v583, %v609
        %v612 = vadd.f32 %v605, %v610
        %v613 = vpack.c.bf16 %v612, %v612
        %v614 = vld [vmem:[%s1] sm:$0xf]
        %v615 = vld [vmem:[%s1 + $0x4] sm:$0xf]
        %v616 = vld [vmem:[%s1 + $0x8] sm:$0xf]
        %v617 = vld [vmem:[%s1 + $0xc] sm:$0xf]
        %v622 = vunpack.c.l.b16 %v614
        %v623 = vunpack.c.l.b16 %v615
        %v624 = vunpack.c.l.b16 %v616
        %v625 = vunpack.c.l.b16 %v617
        %v626 = vpack.c.b16 %v623, %v622
        %v627 = vpack.c.b16 %v625, %v624
        %v631 = vsel %vm584, %v613, 0
        %633 = vmatprep.subr.bf16.mxu0 0
        %634 = vmatpush1.bf16.msra.mxu0 %v626
        %635 = vmatprep.subr.bf16.mxu0 0
        %636 = vmatpush1.bf16.msra.mxu0 %v627
        %637 = vmatprep.subr.bf16.mxu0 0
        %638 = vmatpush1.bf16.msra.mxu0 0
        %639 = vmatprep.subr.bf16.mxu0 0
        %640 = vmatpush1.bf16.msra.mxu0 0
        %641 = vmatprep.subr.bf16.mxu0 0
        %642 = vmatpush1.bf16.msra.mxu0 0
        %643 = vmatprep.subr.bf16.mxu0 0
        %644 = vmatpush1.bf16.msra.mxu0 0
        %645 = vmatprep.subr.bf16.mxu0 0
        %646 = vmatpush1.bf16.msra.mxu0 0
        %647 = vmatprep.subr.bf16.mxu0 0
        %648 = vmatpush1.bf16.msra.mxu0 0
        %649 = vmatprep.subr.bf16.mxu0 0
        %650 = vmatpush1.bf16.msra.mxu0 0
        %651 = vmatprep.subr.bf16.mxu0 0
        %652 = vmatpush1.bf16.msra.mxu0 0
        %653 = vmatprep.subr.bf16.mxu0 0
        %654 = vmatpush1.bf16.msra.mxu0 0
        %655 = vmatprep.subr.bf16.mxu0 0
        %656 = vmatpush1.bf16.msra.mxu0 0
        %657 = vmatprep.subr.bf16.mxu0 0
        %658 = vmatpush1.bf16.msra.mxu0 0
        %659 = vmatprep.subr.bf16.mxu0 0
        %660 = vmatpush1.bf16.msra.mxu0 0
        %661 = vmatprep.subr.bf16.mxu0 0
        %662 = vmatpush1.bf16.msra.mxu0 0
        %663 = vmatprep.subr.bf16.mxu0 0
        %664 = vmatpush1.bf16.msra.mxu0 0
        %665 = vmatprep.mubr.bf16.mxu0 0
        %666 = vmatmul.mubr.bf16.gmra.mrb[0].mxu0 %v631
        %v667 = vpop.f32.mrb[0].mxu0
        %v668 = vadd.f32 0.0, %v667
        %v669 = vpop.f32.mrb[0].mxu0
        %v670 = vpop.f32.mrb[0].mxu0
        %v671 = vpop.f32.mrb[0].mxu0
        %672 = vdwg.mxu0
        %v673 = vpack.c.bf16 %v668, %v668
        %v674 = vld [vmem:[%s2] sm:$0xf]
        %v675 = vld [vmem:[%s2 + $0x4] sm:$0xf]
        %v676 = vld [vmem:[%s2 + $0x8] sm:$0xf]
        %v677 = vld [vmem:[%s2 + $0xc] sm:$0xf]
        %v682 = vunpack.c.l.b16 %v674
        %v683 = vunpack.c.l.b16 %v675
        %v684 = vunpack.c.l.b16 %v676
        %v685 = vunpack.c.l.b16 %v677
        %v686 = vpack.c.b16 %v683, %v682
        %v687 = vpack.c.b16 %v685, %v684
        %690 = vmatprep.subr.bf16.mxu0 0
        %691 = vmatpush1.bf16.msra.mxu0 %v686
        %692 = vmatprep.subr.bf16.mxu0 0
        %693 = vmatpush1.bf16.msra.mxu0 %v687
        %694 = vmatprep.subr.bf16.mxu0 0
        %695 = vmatpush1.bf16.msra.mxu0 0
        %696 = vmatprep.subr.bf16.mxu0 0
        %697 = vmatpush1.bf16.msra.mxu0 0
        %698 = vmatprep.subr.bf16.mxu0 0
        %699 = vmatpush1.bf16.msra.mxu0 0
        %700 = vmatprep.subr.bf16.mxu0 0
        %701 = vmatpush1.bf16.msra.mxu0 0
        %702 = vmatprep.subr.bf16.mxu0 0
        %703 = vmatpush1.bf16.msra.mxu0 0
        %704 = vmatprep.subr.bf16.mxu0 0
        %705 = vmatpush1.bf16.msra.mxu0 0
        %706 = vmatprep.subr.bf16.mxu0 0
        %707 = vmatpush1.bf16.msra.mxu0 0
        %708 = vmatprep.subr.bf16.mxu0 0
        %709 = vmatpush1.bf16.msra.mxu0 0
        %710 = vmatprep.subr.bf16.mxu0 0
        %711 = vmatpush1.bf16.msra.mxu0 0
        %712 = vmatprep.subr.bf16.mxu0 0
        %713 = vmatpush1.bf16.msra.mxu0 0
        %714 = vmatprep.subr.bf16.mxu0 0
        %715 = vmatpush1.bf16.msra.mxu0 0
        %716 = vmatprep.subr.bf16.mxu0 0
        %717 = vmatpush1.bf16.msra.mxu0 0
        %718 = vmatprep.subr.bf16.mxu0 0
        %719 = vmatpush1.bf16.msra.mxu0 0
        %720 = vmatprep.subr.bf16.mxu0 0
        %721 = vmatpush1.bf16.msra.mxu0 0
        %722 = vmatprep.mubr.bf16.mxu0 0
        %723 = vmatmul.mubr.bf16.gmra.mrb[0].mxu0 %v631
        %v724 = vpop.f32.mrb[0].mxu0
        %v725 = vadd.f32 0.0, %v724
        %v726 = vpop.f32.mrb[0].mxu0
        %v727 = vpop.f32.mrb[0].mxu0
        %v728 = vpop.f32.mrb[0].mxu0
        %729 = vdwg.mxu0
        %v730 = vpack.c.bf16 %v725, %v725
        %v731 = vld [vmem:[%s3] sm:$0xf]
        %v732 = vld [vmem:[%s3 + $0x4] sm:$0xf]
        %v733 = vld [vmem:[%s3 + $0x8] sm:$0xf]
        %v734 = vld [vmem:[%s3 + $0xc] sm:$0xf]
        %v739 = vunpack.c.l.b16 %v731
        %v740 = vunpack.c.l.b16 %v732
        %v741 = vunpack.c.l.b16 %v733
        %v742 = vunpack.c.l.b16 %v734
        %v743 = vpack.c.b16 %v740, %v739
        %v744 = vpack.c.b16 %v742, %v741
        %747 = vmatprep.subr.bf16.mxu0 0
        %748 = vmatpush1.bf16.msra.mxu0 %v743
        %749 = vmatprep.subr.bf16.mxu0 0
        %750 = vmatpush1.bf16.msra.mxu0 %v744
        %751 = vmatprep.subr.bf16.mxu0 0
        %752 = vmatpush1.bf16.msra.mxu0 0
        %753 = vmatprep.subr.bf16.mxu0 0
        %754 = vmatpush1.bf16.msra.mxu0 0
        %755 = vmatprep.subr.bf16.mxu0 0
        %756 = vmatpush1.bf16.msra.mxu0 0
        %757 = vmatprep.subr.bf16.mxu0 0
        %758 = vmatpush1.bf16.msra.mxu0 0
        %759 = vmatprep.subr.bf16.mxu0 0
        %760 = vmatpush1.bf16.msra.mxu0 0
        %761 = vmatprep.subr.bf16.mxu0 0
        %762 = vmatpush1.bf16.msra.mxu0 0
        %763 = vmatprep.subr.bf16.mxu0 0
        %764 = vmatpush1.bf16.msra.mxu0 0
        %765 = vmatprep.subr.bf16.mxu0 0
        %766 = vmatpush1.bf16.msra.mxu0 0
        %767 = vmatprep.subr.bf16.mxu0 0
        %768 = vmatpush1.bf16.msra.mxu0 0
        %769 = vmatprep.subr.bf16.mxu0 0
        %770 = vmatpush1.bf16.msra.mxu0 0
        %771 = vmatprep.subr.bf16.mxu0 0
        %772 = vmatpush1.bf16.msra.mxu0 0
        %773 = vmatprep.subr.bf16.mxu0 0
        %774 = vmatpush1.bf16.msra.mxu0 0
        %775 = vmatprep.subr.bf16.mxu0 0
        %776 = vmatpush1.bf16.msra.mxu0 0
        %777 = vmatprep.subr.bf16.mxu0 0
        %778 = vmatpush1.bf16.msra.mxu0 0
        %779 = vmatprep.mubr.bf16.mxu0 0
        %780 = vmatmul.mubr.bf16.gmra.mrb[0].mxu0 %v631
        %v781 = vpop.f32.mrb[0].mxu0
        %v782 = vadd.f32 0.0, %v781
        %v783 = vpop.f32.mrb[0].mxu0
        %v784 = vpop.f32.mrb[0].mxu0
        %v785 = vpop.f32.mrb[0].mxu0
        %786 = vdwg.mxu0
        %v787 = vpack.c.bf16 %v782, %v782
        %s788 = smul.u32 %s37, 8
        %s789 = sshra.s32 %s788, 3
        %s790 = sand.u32 %s788, 7
        %s791 = smul.addr %s789, 4
        %s792 = scalar_lea.vmem [#allocation2], %s791
        %vm793 = vcmask 257024
        %794 = vst.msk [vmem:[%s792] sm:$0xf] %vm793, %v730
        %s795 = smul.addr %s789, 4
        %s796 = scalar_lea.vmem [#allocation3], %s795
        %797 = vst.msk [vmem:[%s796] sm:$0xf] %vm793, %v787
        %v798 = vlaneseq
        %v799 = vshrl.u32 %v798, 7
        %v800 = vstv %s788
        %v801 = vadd.s32 %v800, %v799
        %v802 = vlaneseq
        %v803 = vand.u32 %v802, 127
        %s804 = sadd.s32 %s37, 1
        // While loop
        $region97: #{tpu_custom_call.1} parent=83 // loop_pre_header
          _
        $region98: #{tpu_custom_call.1} parent=83 // loop_header
          %s806 = sphi 0, %s808
          %p807 = scmp.ge.s32.totalorder %s806, %s804
          %v811 = vphi -1e+30, %v887
          %v812 = vphi 0.0, %v898
          %v813 = vphi 0.0, %v948
          %v814 = vphi -1e+30, %v1008
          %v815 = vphi 0.0, %v1019
          %v816 = vphi 0.0, %v1073
          %v817 = vphi -1e+30, %v1129
          %v818 = vphi 0.0, %v1140
          %v819 = vphi 0.0, %v1191
          %v820 = vphi -1e+30, %v1247
          %v821 = vphi 0.0, %v1258
          %v822 = vphi 0.0, %v1309
        $region99: #{tpu_custom_call.1} parent=83 // loop_header_branch
          %810 = sbr.rel (%p807) target = $region103
        $region100: #{tpu_custom_call.1} parent=83 // loop_body
          %s823 = smul.u32 %s806, 8
          %s824 = sshra.s32 %s823, 3
          %s825 = sand.u32 %s823, 7
          %s826 = smul.addr %s824, 4
          %s827 = scalar_lea.vmem [#allocation2], %s826
          %v828 = vld [vmem:[%s827] sm:$0xf]
          %s829 = smul.addr %s824, 4
          %s830 = scalar_lea.vmem [#allocation3], %s829
          %v831 = vld [vmem:[%s830] sm:$0xf]
          %v832 = vstv %s823
          %v833 = vadd.s32 %v832, %v803
          %vm834 = vcmp.le.s32.totalorder %v833, %v801
          %vm835 = vcmask 64512
          %v837 = vsel %vm835, %v673, 0
          %v840 = vsel %vm835, %v828, 0
          %842 = vmatprep.subr.bf16.mxu0 0
          %843 = vmatpush1.bf16.xpose.msra.mxu0 %v840
          %844 = vmatprep.subr.bf16.mxu0 0
          %845 = vmatpush1.bf16.xpose.msra.mxu0 0
          %846 = vmatprep.subr.bf16.mxu0 0
          %847 = vmatpush1.bf16.xpose.msra.mxu0 0
          %848 = vmatprep.subr.bf16.mxu0 0
          %849 = vmatpush1.bf16.xpose.msra.mxu0 0
          %850 = vmatprep.subr.bf16.mxu0 0
          %851 = vmatpush1.bf16.xpose.msra.mxu0 0
          %852 = vmatprep.subr.bf16.mxu0 0
          %853 = vmatpush1.bf16.xpose.msra.mxu0 0
          %854 = vmatprep.subr.bf16.mxu0 0
          %855 = vmatpush1.bf16.xpose.msra.mxu0 0
          %856 = vmatprep.subr.bf16.mxu0 0
          %857 = vmatpush1.bf16.xpose.msra.mxu0 0
          %858 = vmatprep.subr.bf16.mxu0 0
          %859 = vmatpush1.bf16.xpose.msra.mxu0 0
          %860 = vmatprep.subr.bf16.mxu0 0
          %861 = vmatpush1.bf16.xpose.msra.mxu0 0
          %862 = vmatprep.subr.bf16.mxu0 0
          %863 = vmatpush1.bf16.xpose.msra.mxu0 0
          %864 = vmatprep.subr.bf16.mxu0 0
          %865 = vmatpush1.bf16.xpose.msra.mxu0 0
          %866 = vmatprep.subr.bf16.mxu0 0
          %867 = vmatpush1.bf16.xpose.msra.mxu0 0
          %868 = vmatprep.subr.bf16.mxu0 0
          %869 = vmatpush1.bf16.xpose.msra.mxu0 0
          %870 = vmatprep.subr.bf16.mxu0 0
          %871 = vmatpush1.bf16.xpose.msra.mxu0 0
          %872 = vmatprep.subr.bf16.mxu0 0
          %873 = vmatpush1.bf16.xpose.msra.mxu0 0
          %874 = vmatprep.mubr.bf16.mxu0 0
          %875 = vmatmul.mubr.bf16.gmra.mrb[0].mxu0 %v837
          %v876 = vpop.f32.mrb[0].mxu0
          %v877 = vadd.f32 0.0, %v876
          %v878 = vpop.f32.mrb[0].mxu0
          %v879 = vpop.f32.mrb[0].mxu0
          %v880 = vpop.f32.mrb[0].mxu0
          %881 = vdwg.mxu0
          %v882 = vmul.f32 %v877, 0.35355338
          %v883 = vsel %vm834, %v882, -1e+30
          %v884 = vsel %vm835, %v883, -inf
          %885 = vmax.xlane.f32.xlu0 %v884
          %v886 = vpop.xlane.xlu0 %885
          %v887 = vmax.f32 %v811, %v886
          %v888 = vsub.f32 %v811, %v887
          %v889 = vmul.f32 %v888, 1.442695
          %v890 = vpow.pop %v889
          %v891 = vsub.f32 %v883, %v887
          %v892 = vmul.f32 %v891, 1.442695
          %v893 = vpow.pop %v892
          %v894 = vmul.f32 %v890, %v812
          %v895 = vsel %vm835, %v893, 0.0
          %896 = vadd.xlane.f32.xlu0 %v895
          %v897 = vpop.xlane.xlu0 %896
          %v898 = vadd.f32 %v894, %v897
          %v899 = vmul.f32 %v890, %v813
          %v900 = vpack.c.bf16 %v893, %v893
          %v902 = vsel %vm835, %v900, 0
          %vm904 = vcmask 1043456
          %v906 = vsel %vm904, %v831, 0
          %908 = vmatprep.subr.bf16.mxu0 0
          %909 = vmatpush1.bf16.msra.mxu0 %v906
          %910 = vmatprep.subr.bf16.mxu0 0
          %911 = vmatpush1.bf16.msra.mxu0 0
          %912 = vmatprep.subr.bf16.mxu0 0
          %913 = vmatpush1.bf16.msra.mxu0 0
          %914 = vmatprep.subr.bf16.mxu0 0
          %915 = vmatpush1.bf16.msra.mxu0 0
          %916 = vmatprep.subr.bf16.mxu0 0
          %917 = vmatpush1.bf16.msra.mxu0 0
          %918 = vmatprep.subr.bf16.mxu0 0
          %919 = vmatpush1.bf16.msra.mxu0 0
          %920 = vmatprep.subr.bf16.mxu0 0
          %921 = vmatpush1.bf16.msra.mxu0 0
          %922 = vmatprep.subr.bf16.mxu0 0
          %923 = vmatpush1.bf16.msra.mxu0 0
          %924 = vmatprep.subr.bf16.mxu0 0
          %925 = vmatpush1.bf16.msra.mxu0 0
          %926 = vmatprep.subr.bf16.mxu0 0
          %927 = vmatpush1.bf16.msra.mxu0 0
          %928 = vmatprep.subr.bf16.mxu0 0
          %929 = vmatpush1.bf16.msra.mxu0 0
          %930 = vmatprep.subr.bf16.mxu0 0
          %931 = vmatpush1.bf16.msra.mxu0 0
          %932 = vmatprep.subr.bf16.mxu0 0
          %933 = vmatpush1.bf16.msra.mxu0 0
          %934 = vmatprep.subr.bf16.mxu0 0
          %935 = vmatpush1.bf16.msra.mxu0 0
          %936 = vmatprep.subr.bf16.mxu0 0
          %937 = vmatpush1.bf16.msra.mxu0 0
          %938 = vmatprep.subr.bf16.mxu0 0
          %939 = vmatpush1.bf16.msra.mxu0 0
          %940 = vmatprep.mubr.bf16.mxu0 0
          %941 = vmatmul.mubr.bf16.gmra.mrb[0].mxu0 %v902
          %v942 = vpop.f32.mrb[0].mxu0
          %v943 = vadd.f32 0.0, %v942
          %v944 = vpop.f32.mrb[0].mxu0
          %v945 = vpop.f32.mrb[0].mxu0
          %v946 = vpop.f32.mrb[0].mxu0
          %947 = vdwg.mxu0
          %v948 = vadd.f32 %v899, %v943
          %950 = vrot.lane.b32.xlu0 %v673, 120
          %v951 = vpop.permute.xlu0 %950
          %v953 = vunpack.c.l.b16 %v828
          %v954 = vpack.c.b16 %v953, %v953
          %955 = vrot.lane.b32.xlu0 %v954, 120
          %v956 = vpop.permute.xlu0 %955
          %v958 = vsel %vm835, %v951, 0
          %v961 = vsel %vm835, %v956, 0
          %963 = vmatprep.subr.bf16.mxu0 0
          %964 = vmatpush1.bf16.xpose.msra.mxu0 %v961
          %965 = vmatprep.subr.bf16.mxu0 0
          %966 = vmatpush1.bf16.xpose.msra.mxu0 0
          %967 = vmatprep.subr.bf16.mxu0 0
          %968 = vmatpush1.bf16.xpose.msra.mxu0 0
          %969 = vmatprep.subr.bf16.mxu0 0
          %970 = vmatpush1.bf16.xpose.msra.mxu0 0
          %971 = vmatprep.subr.bf16.mxu0 0
          %972 = vmatpush1.bf16.xpose.msra.mxu0 0
          %973 = vmatprep.subr.bf16.mxu0 0
          %974 = vmatpush1.bf16.xpose.msra.mxu0 0
          %975 = vmatprep.subr.bf16.mxu0 0
          %976 = vmatpush1.bf16.xpose.msra.mxu0 0
          %977 = vmatprep.subr.bf16.mxu0 0
          %978 = vmatpush1.bf16.xpose.msra.mxu0 0
          %979 = vmatprep.subr.bf16.mxu0 0
          %980 = vmatpush1.bf16.xpose.msra.mxu0 0
          %981 = vmatprep.subr.bf16.mxu0 0
          %982 = vmatpush1.bf16.xpose.msra.mxu0 0
          %983 = vmatprep.subr.bf16.mxu0 0
          %984 = vmatpush1.bf16.xpose.msra.mxu0 0
          %985 = vmatprep.subr.bf16.mxu0 0
          %986 = vmatpush1.bf16.xpose.msra.mxu0 0
          %987 = vmatprep.subr.bf16.mxu0 0
          %988 = vmatpush1.bf16.xpose.msra.mxu0 0
          %989 = vmatprep.subr.bf16.mxu0 0
          %990 = vmatpush1.bf16.xpose.msra.mxu0 0
          %991 = vmatprep.subr.bf16.mxu0 0
          %992 = vmatpush1.bf16.xpose.msra.mxu0 0
          %993 = vmatprep.subr.bf16.mxu0 0
          %994 = vmatpush1.bf16.xpose.msra.mxu0 0
          %995 = vmatprep.mubr.bf16.mxu0 0
          %996 = vmatmul.mubr.bf16.gmra.mrb[0].mxu0 %v958
          %v997 = vpop.f32.mrb[0].mxu0
          %v998 = vadd.f32 0.0, %v997
          %v999 = vpop.f32.mrb[0].mxu0
          %v1000 = vpop.f32.mrb[0].mxu0
          %v1001 = vpop.f32.mrb[0].mxu0
          %1002 = vdwg.mxu0
          %v1003 = vmul.f32 %v998, 0.35355338
          %v1004 = vsel %vm834, %v1003, -1e+30
          %v1005 = vsel %vm835, %v1004, -inf
          %1006 = vmax.xlane.f32.xlu0 %v1005
          %v1007 = vpop.xlane.xlu0 %1006
          %v1008 = vmax.f32 %v814, %v1007
          %v1009 = vsub.f32 %v814, %v1008
          %v1010 = vmul.f32 %v1009, 1.442695
          %v1011 = vpow.pop %v1010
          %v1012 = vsub.f32 %v1004, %v1008
          %v1013 = vmul.f32 %v1012, 1.442695
          %v1014 = vpow.pop %v1013
          %v1015 = vmul.f32 %v1011, %v815
          %v1016 = vsel %vm835, %v1014, 0.0
          %1017 = vadd.xlane.f32.xlu0 %v1016
          %v1018 = vpop.xlane.xlu0 %1017
          %v1019 = vadd.f32 %v1015, %v1018
          %v1020 = vmul.f32 %v1011, %v816
          %v1021 = vpack.c.bf16 %v1014, %v1014
          %v1023 = vunpack.c.l.b16 %v831
          %v1024 = vpack.c.b16 %v1023, %v1023
          %1025 = vrot.lane.b32.xlu0 %v1024, 120
          %v1026 = vpop.permute.xlu0 %1025
          %v1028 = vsel %vm835, %v1021, 0
          %v1031 = vsel %vm904, %v1026, 0
          %1033 = vmatprep.subr.bf16.mxu0 0
          %1034 = vmatpush1.bf16.msra.mxu0 %v1031
          %1035 = vmatprep.subr.bf16.mxu0 0
          %1036 = vmatpush1.bf16.msra.mxu0 0
          %1037 = vmatprep.subr.bf16.mxu0 0
          %1038 = vmatpush1.bf16.msra.mxu0 0
          %1039 = vmatprep.subr.bf16.mxu0 0
          %1040 = vmatpush1.bf16.msra.mxu0 0
          %1041 = vmatprep.subr.bf16.mxu0 0
          %1042 = vmatpush1.bf16.msra.mxu0 0
          %1043 = vmatprep.subr.bf16.mxu0 0
          %1044 = vmatpush1.bf16.msra.mxu0 0
          %1045 = vmatprep.subr.bf16.mxu0 0
          %1046 = vmatpush1.bf16.msra.mxu0 0
          %1047 = vmatprep.subr.bf16.mxu0 0
          %1048 = vmatpush1.bf16.msra.mxu0 0
          %1049 = vmatprep.subr.bf16.mxu0 0
          %1050 = vmatpush1.bf16.msra.mxu0 0
          %1051 = vmatprep.subr.bf16.mxu0 0
          %1052 = vmatpush1.bf16.msra.mxu0 0
          %1053 = vmatprep.subr.bf16.mxu0 0
          %1054 = vmatpush1.bf16.msra.mxu0 0
          %1055 = vmatprep.subr.bf16.mxu0 0
          %1056 = vmatpush1.bf16.msra.mxu0 0
          %1057 = vmatprep.subr.bf16.mxu0 0
          %1058 = vmatpush1.bf16.msra.mxu0 0
          %1059 = vmatprep.subr.bf16.mxu0 0
          %1060 = vmatpush1.bf16.msra.mxu0 0
          %1061 = vmatprep.subr.bf16.mxu0 0
          %1062 = vmatpush1.bf16.msra.mxu0 0
          %1063 = vmatprep.subr.bf16.mxu0 0
          %1064 = vmatpush1.bf16.msra.mxu0 0
          %1065 = vmatprep.mubr.bf16.mxu0 0
          %1066 = vmatmul.mubr.bf16.gmra.mrb[0].mxu0 %v1028
          %v1067 = vpop.f32.mrb[0].mxu0
          %v1068 = vadd.f32 0.0, %v1067
          %v1069 = vpop.f32.mrb[0].mxu0
          %v1070 = vpop.f32.mrb[0].mxu0
          %v1071 = vpop.f32.mrb[0].mxu0
          %1072 = vdwg.mxu0
          %v1073 = vadd.f32 %v1020, %v1068
          %1074 = vrot.lane.b32.xlu0 %v673, 112
          %v1075 = vpop.permute.xlu0 %1074
          %1076 = vrot.lane.b32.xlu0 %v954, 112
          %v1077 = vpop.permute.xlu0 %1076
          %v1079 = vsel %vm835, %v1075, 0
          %v1082 = vsel %vm835, %v1077, 0
          %1084 = vmatprep.subr.bf16.mxu0 0
          %1085 = vmatpush1.bf16.xpose.msra.mxu0 %v1082
          %1086 = vmatprep.subr.bf16.mxu0 0
          %1087 = vmatpush1.bf16.xpose.msra.mxu0 0
          %1088 = vmatprep.subr.bf16.mxu0 0
          %1089 = vmatpush1.bf16.xpose.msra.mxu0 0
          %1090 = vmatprep.subr.bf16.mxu0 0
          %1091 = vmatpush1.bf16.xpose.msra.mxu0 0
          %1092 = vmatprep.subr.bf16.mxu0 0
          %1093 = vmatpush1.bf16.xpose.msra.mxu0 0
          %1094 = vmatprep.subr.bf16.mxu0 0
          %1095 = vmatpush1.bf16.xpose.msra.mxu0 0
          %1096 = vmatprep.subr.bf16.mxu0 0
          %1097 = vmatpush1.bf16.xpose.msra.mxu0 0
          %1098 = vmatprep.subr.bf16.mxu0 0
          %1099 = vmatpush1.bf16.xpose.msra.mxu0 0
          %1100 = vmatprep.subr.bf16.mxu0 0
          %1101 = vmatpush1.bf16.xpose.msra.mxu0 0
          %1102 = vmatprep.subr.bf16.mxu0 0
          %1103 = vmatpush1.bf16.xpose.msra.mxu0 0
          %1104 = vmatprep.subr.bf16.mxu0 0
          %1105 = vmatpush1.bf16.xpose.msra.mxu0 0
          %1106 = vmatprep.subr.bf16.mxu0 0
          %1107 = vmatpush1.bf16.xpose.msra.mxu0 0
          %1108 = vmatprep.subr.bf16.mxu0 0
          %1109 = vmatpush1.bf16.xpose.msra.mxu0 0
          %1110 = vmatprep.subr.bf16.mxu0 0
          %1111 = vmatpush1.bf16.xpose.msra.mxu0 0
          %1112 = vmatprep.subr.bf16.mxu0 0
          %1113 = vmatpush1.bf16.xpose.msra.mxu0 0
          %1114 = vmatprep.subr.bf16.mxu0 0
          %1115 = vmatpush1.bf16.xpose.msra.mxu0 0
          %1116 = vmatprep.mubr.bf16.mxu0 0
          %1117 = vmatmul.mubr.bf16.gmra.mrb[0].mxu0 %v1079
          %v1118 = vpop.f32.mrb[0].mxu0
          %v1119 = vadd.f32 0.0, %v1118
          %v1120 = vpop.f32.mrb[0].mxu0
          %v1121 = vpop.f32.mrb[0].mxu0
          %v1122 = vpop.f32.mrb[0].mxu0
          %1123 = vdwg.mxu0
          %v1124 = vmul.f32 %v1119, 0.35355338
          %v1125 = vsel %vm834, %v1124, -1e+30
          %v1126 = vsel %vm835, %v1125, -inf
          %1127 = vmax.xlane.f32.xlu0 %v1126
          %v1128 = vpop.xlane.xlu0 %1127
          %v1129 = vmax.f32 %v817, %v1128
          %v1130 = vsub.f32 %v817, %v1129
          %v1131 = vmul.f32 %v1130, 1.442695
          %v1132 = vpow.pop %v1131
          %v1133 = vsub.f32 %v1125, %v1129
          %v1134 = vmul.f32 %v1133, 1.442695
          %v1135 = vpow.pop %v1134
          %v1136 = vmul.f32 %v1132, %v818
          %v1137 = vsel %vm835, %v1135, 0.0
          %1138 = vadd.xlane.f32.xlu0 %v1137
          %v1139 = vpop.xlane.xlu0 %1138
          %v1140 = vadd.f32 %v1136, %v1139
          %v1141 = vmul.f32 %v1132, %v819
          %v1142 = vpack.c.bf16 %v1135, %v1135
          %1143 = vrot.lane.b32.xlu0 %v1024, 112
          %v1144 = vpop.permute.xlu0 %1143
          %v1146 = vsel %vm835, %v1142, 0
          %v1149 = vsel %vm904, %v1144, 0
          %1151 = vmatprep.subr.bf16.mxu0 0
          %1152 = vmatpush1.bf16.msra.mxu0 %v1149
          %1153 = vmatprep.subr.bf16.mxu0 0
          %1154 = vmatpush1.bf16.msra.mxu0 0
          %1155 = vmatprep.subr.bf16.mxu0 0
          %1156 = vmatpush1.bf16.msra.mxu0 0
          %1157 = vmatprep.subr.bf16.mxu0 0
          %1158 = vmatpush1.bf16.msra.mxu0 0
          %1159 = vmatprep.subr.bf16.mxu0 0
          %1160 = vmatpush1.bf16.msra.mxu0 0
          %1161 = vmatprep.subr.bf16.mxu0 0
          %1162 = vmatpush1.bf16.msra.mxu0 0
          %1163 = vmatprep.subr.bf16.mxu0 0
          %1164 = vmatpush1.bf16.msra.mxu0 0
          %1165 = vmatprep.subr.bf16.mxu0 0
          %1166 = vmatpush1.bf16.msra.mxu0 0
          %1167 = vmatprep.subr.bf16.mxu0 0
          %1168 = vmatpush1.bf16.msra.mxu0 0
          %1169 = vmatprep.subr.bf16.mxu0 0
          %1170 = vmatpush1.bf16.msra.mxu0 0
          %1171 = vmatprep.subr.bf16.mxu0 0
          %1172 = vmatpush1.bf16.msra.mxu0 0
          %1173 = vmatprep.subr.bf16.mxu0 0
          %1174 = vmatpush1.bf16.msra.mxu0 0
          %1175 = vmatprep.subr.bf16.mxu0 0
          %1176 = vmatpush1.bf16.msra.mxu0 0
          %1177 = vmatprep.subr.bf16.mxu0 0
          %1178 = vmatpush1.bf16.msra.mxu0 0
          %1179 = vmatprep.subr.bf16.mxu0 0
          %1180 = vmatpush1.bf16.msra.mxu0 0
          %1181 = vmatprep.subr.bf16.mxu0 0
          %1182 = vmatpush1.bf16.msra.mxu0 0
          %1183 = vmatprep.mubr.bf16.mxu0 0
          %1184 = vmatmul.mubr.bf16.gmra.mrb[0].mxu0 %v1146
          %v1185 = vpop.f32.mrb[0].mxu0
          %v1186 = vadd.f32 0.0, %v1185
          %v1187 = vpop.f32.mrb[0].mxu0
          %v1188 = vpop.f32.mrb[0].mxu0
          %v1189 = vpop.f32.mrb[0].mxu0
          %1190 = vdwg.mxu0
          %v1191 = vadd.f32 %v1141, %v1186
          %1192 = vrot.lane.b32.xlu0 %v673, 104
          %v1193 = vpop.permute.xlu0 %1192
          %1194 = vrot.lane.b32.xlu0 %v954, 104
          %v1195 = vpop.permute.xlu0 %1194
          %v1197 = vsel %vm835, %v1193, 0
          %v1200 = vsel %vm835, %v1195, 0
          %1202 = vmatprep.subr.bf16.mxu0 0
          %1203 = vmatpush1.bf16.xpose.msra.mxu0 %v1200
          %1204 = vmatprep.subr.bf16.mxu0 0
          %1205 = vmatpush1.bf16.xpose.msra.mxu0 0
          %1206 = vmatprep.subr.bf16.mxu0 0
          %1207 = vmatpush1.bf16.xpose.msra.mxu0 0
          %1208 = vmatprep.subr.bf16.mxu0 0
          %1209 = vmatpush1.bf16.xpose.msra.mxu0 0
          %1210 = vmatprep.subr.bf16.mxu0 0
          %1211 = vmatpush1.bf16.xpose.msra.mxu0 0
          %1212 = vmatprep.subr.bf16.mxu0 0
          %1213 = vmatpush1.bf16.xpose.msra.mxu0 0
          %1214 = vmatprep.subr.bf16.mxu0 0
          %1215 = vmatpush1.bf16.xpose.msra.mxu0 0
          %1216 = vmatprep.subr.bf16.mxu0 0
          %1217 = vmatpush1.bf16.xpose.msra.mxu0 0
          %1218 = vmatprep.subr.bf16.mxu0 0
          %1219 = vmatpush1.bf16.xpose.msra.mxu0 0
          %1220 = vmatprep.subr.bf16.mxu0 0
          %1221 = vmatpush1.bf16.xpose.msra.mxu0 0
          %1222 = vmatprep.subr.bf16.mxu0 0
          %1223 = vmatpush1.bf16.xpose.msra.mxu0 0
          %1224 = vmatprep.subr.bf16.mxu0 0
          %1225 = vmatpush1.bf16.xpose.msra.mxu0 0
          %1226 = vmatprep.subr.bf16.mxu0 0
          %1227 = vmatpush1.bf16.xpose.msra.mxu0 0
          %1228 = vmatprep.subr.bf16.mxu0 0
          %1229 = vmatpush1.bf16.xpose.msra.mxu0 0
          %1230 = vmatprep.subr.bf16.mxu0 0
          %1231 = vmatpush1.bf16.xpose.msra.mxu0 0
          %1232 = vmatprep.subr.bf16.mxu0 0
          %1233 = vmatpush1.bf16.xpose.msra.mxu0 0
          %1234 = vmatprep.mubr.bf16.mxu0 0
          %1235 = vmatmul.mubr.bf16.gmra.mrb[0].mxu0 %v1197
          %v1236 = vpop.f32.mrb[0].mxu0
          %v1237 = vadd.f32 0.0, %v1236
          %v1238 = vpop.f32.mrb[0].mxu0
          %v1239 = vpop.f32.mrb[0].mxu0
          %v1240 = vpop.f32.mrb[0].mxu0
          %1241 = vdwg.mxu0
          %v1242 = vmul.f32 %v1237, 0.35355338
          %v1243 = vsel %vm834, %v1242, -1e+30
          %v1244 = vsel %vm835, %v1243, -inf
          %1245 = vmax.xlane.f32.xlu0 %v1244
          %v1246 = vpop.xlane.xlu0 %1245
          %v1247 = vmax.f32 %v820, %v1246
          %v1248 = vsub.f32 %v820, %v1247
          %v1249 = vmul.f32 %v1248, 1.442695
          %v1250 = vpow.pop %v1249
          %v1251 = vsub.f32 %v1243, %v1247
          %v1252 = vmul.f32 %v1251, 1.442695
          %v1253 = vpow.pop %v1252
          %v1254 = vmul.f32 %v1250, %v821
          %v1255 = vsel %vm835, %v1253, 0.0
          %1256 = vadd.xlane.f32.xlu0 %v1255
          %v1257 = vpop.xlane.xlu0 %1256
          %v1258 = vadd.f32 %v1254, %v1257
          %v1259 = vmul.f32 %v1250, %v822
          %v1260 = vpack.c.bf16 %v1253, %v1253
          %1261 = vrot.lane.b32.xlu0 %v1024, 104
          %v1262 = vpop.permute.xlu0 %1261
          %v1264 = vsel %vm835, %v1260, 0
          %v1267 = vsel %vm904, %v1262, 0
          %1269 = vmatprep.subr.bf16.mxu0 0
          %1270 = vmatpush1.bf16.msra.mxu0 %v1267
          %1271 = vmatprep.subr.bf16.mxu0 0
          %1272 = vmatpush1.bf16.msra.mxu0 0
          %1273 = vmatprep.subr.bf16.mxu0 0
          %1274 = vmatpush1.bf16.msra.mxu0 0
          %1275 = vmatprep.subr.bf16.mxu0 0
          %1276 = vmatpush1.bf16.msra.mxu0 0
          %1277 = vmatprep.subr.bf16.mxu0 0
          %1278 = vmatpush1.bf16.msra.mxu0 0
          %1279 = vmatprep.subr.bf16.mxu0 0
          %1280 = vmatpush1.bf16.msra.mxu0 0
          %1281 = vmatprep.subr.bf16.mxu0 0
          %1282 = vmatpush1.bf16.msra.mxu0 0
          %1283 = vmatprep.subr.bf16.mxu0 0
          %1284 = vmatpush1.bf16.msra.mxu0 0
          %1285 = vmatprep.subr.bf16.mxu0 0
          %1286 = vmatpush1.bf16.msra.mxu0 0
          %1287 = vmatprep.subr.bf16.mxu0 0
          %1288 = vmatpush1.bf16.msra.mxu0 0
          %1289 = vmatprep.subr.bf16.mxu0 0
          %1290 = vmatpush1.bf16.msra.mxu0 0
          %1291 = vmatprep.subr.bf16.mxu0 0
          %1292 = vmatpush1.bf16.msra.mxu0 0
          %1293 = vmatprep.subr.bf16.mxu0 0
          %1294 = vmatpush1.bf16.msra.mxu0 0
          %1295 = vmatprep.subr.bf16.mxu0 0
          %1296 = vmatpush1.bf16.msra.mxu0 0
          %1297 = vmatprep.subr.bf16.mxu0 0
          %1298 = vmatpush1.bf16.msra.mxu0 0
          %1299 = vmatprep.subr.bf16.mxu0 0
          %1300 = vmatpush1.bf16.msra.mxu0 0
          %1301 = vmatprep.mubr.bf16.mxu0 0
          %1302 = vmatmul.mubr.bf16.gmra.mrb[0].mxu0 %v1264
          %v1303 = vpop.f32.mrb[0].mxu0
          %v1304 = vadd.f32 0.0, %v1303
          %v1305 = vpop.f32.mrb[0].mxu0
          %v1306 = vpop.f32.mrb[0].mxu0
          %v1307 = vpop.f32.mrb[0].mxu0
          %1308 = vdwg.mxu0
          %v1309 = vadd.f32 %v1259, %v1304
        $region101: #{tpu_custom_call.1} parent=83 // loop_footer
          %s808 = sadd.s32 %s806, 1
        $region102: #{tpu_custom_call.1} parent=83 // loop_footer_branch
          %805 = sbr.rel target = $region98
        $region103: #{tpu_custom_call.1} parent=83 // loop_exit
          _
        %v1310 = vrcp.pop %v812
        %v1311 = vmul.f32 %v813, %v1310
        %v1312 = vpack.c.bf16 %v1311, %v1311
        %vm1313 = vcmask 60416
        %1314 = vst.msk [vmem:[#allocation4] sm:$0xf] %vm1313, %v1312
        %v1315 = vrcp.pop %v815
        %v1316 = vmul.f32 %v816, %v1315
        %v1317 = vpack.c.bf16 %v1316, %v1316
        %v1319 = vunpack.c.l.b16 %v1317
        %v1320 = vpack.c.b16 %v1319, %v1319
        %1321 = vrot.lane.b32.xlu0 %v1320, 8
        %v1322 = vpop.permute.xlu0 %1321
        %vm1324 = vcmask 126016
        %1325 = vst.msk [vmem:[#allocation4] sm:$0xf] %vm1324, %v1322
        %v1326 = vrcp.pop %v818
        %v1327 = vmul.f32 %v819, %v1326
        %v1328 = vpack.c.bf16 %v1327, %v1327
        %v1330 = vunpack.c.l.b16 %v1328
        %v1331 = vpack.c.b16 %v1330, %v1330
        %1332 = vrot.lane.b32.xlu0 %v1331, 16
        %v1333 = vpop.permute.xlu0 %1332
        %vm1335 = vcmask 191616
        %1336 = vst.msk [vmem:[#allocation4] sm:$0xf] %vm1335, %v1333
        %v1337 = vrcp.pop %v821
        %v1338 = vmul.f32 %v822, %v1337
        %v1339 = vpack.c.bf16 %v1338, %v1338
        %v1341 = vunpack.c.l.b16 %v1339
        %v1342 = vpack.c.b16 %v1341, %v1341
        %1343 = vrot.lane.b32.xlu0 %v1342, 24
        %v1344 = vpop.permute.xlu0 %1343
        %vm1346 = vcmask 257216
        %1347 = vst.msk [vmem:[#allocation4] sm:$0xf] %vm1346, %v1344
        %v1348 = vld [vmem:[#allocation4] sm:$0xf]
        %v1349 = vld [vmem:[%s4] sm:$0xf]
        %v1350 = vld [vmem:[%s4 + $0x4] sm:$0xf]
        %v1351 = vld [vmem:[%s4 + $0x8] sm:$0xf]
        %v1352 = vld [vmem:[%s4 + $0xc] sm:$0xf]
        %v1353 = vld [vmem:[%s5] sm:$0x1]
        %v1355 = vlaneseq
        %v1356 = vshrl.u32 %v1355, 7
        %v1357 = vsub.s32 0, %v1356
        %v1358 = vrot.slane %v1353, %v1357
        %v1364 = vunpack.c.l.b16 %v1349
        %v1365 = vunpack.c.l.b16 %v1350
        %v1366 = vunpack.c.l.b16 %v1351
        %v1367 = vunpack.c.l.b16 %v1352
        %v1368 = vpack.c.b16 %v1365, %v1364
        %v1369 = vpack.c.b16 %v1367, %v1366
        %v1373 = vsel %vm584, %v1348, 0
        %1375 = vmatprep.subr.bf16.mxu0 0
        %1376 = vmatpush1.bf16.msra.mxu0 %v1368
        %1377 = vmatprep.subr.bf16.mxu0 0
        %1378 = vmatpush1.bf16.msra.mxu0 %v1369
        %1379 = vmatprep.subr.bf16.mxu0 0
        %1380 = vmatpush1.bf16.msra.mxu0 0
        %1381 = vmatprep.subr.bf16.mxu0 0
        %1382 = vmatpush1.bf16.msra.mxu0 0
        %1383 = vmatprep.subr.bf16.mxu0 0
        %1384 = vmatpush1.bf16.msra.mxu0 0
        %1385 = vmatprep.subr.bf16.mxu0 0
        %1386 = vmatpush1.bf16.msra.mxu0 0
        %1387 = vmatprep.subr.bf16.mxu0 0
        %1388 = vmatpush1.bf16.msra.mxu0 0
        %1389 = vmatprep.subr.bf16.mxu0 0
        %1390 = vmatpush1.bf16.msra.mxu0 0
        %1391 = vmatprep.subr.bf16.mxu0 0
        %1392 = vmatpush1.bf16.msra.mxu0 0
        %1393 = vmatprep.subr.bf16.mxu0 0
        %1394 = vmatpush1.bf16.msra.mxu0 0
        %1395 = vmatprep.subr.bf16.mxu0 0
        %1396 = vmatpush1.bf16.msra.mxu0 0
        %1397 = vmatprep.subr.bf16.mxu0 0
        %1398 = vmatpush1.bf16.msra.mxu0 0
        %1399 = vmatprep.subr.bf16.mxu0 0
        %1400 = vmatpush1.bf16.msra.mxu0 0
        %1401 = vmatprep.subr.bf16.mxu0 0
        %1402 = vmatpush1.bf16.msra.mxu0 0
        %1403 = vmatprep.subr.bf16.mxu0 0
        %1404 = vmatpush1.bf16.msra.mxu0 0
        %1405 = vmatprep.subr.bf16.mxu0 0
        %1406 = vmatpush1.bf16.msra.mxu0 0
        %1407 = vmatprep.mubr.bf16.mxu0 0
        %1408 = vmatmul.mubr.bf16.gmra.mrb[0].mxu0 %v1373
        %v1409 = vpop.f32.mrb[0].mxu0
        %v1410 = vadd.f32 %v1358, %v1409
        %v1411 = vpop.f32.mrb[0].mxu0
        %v1412 = vpop.f32.mrb[0].mxu0
        %v1413 = vpop.f32.mrb[0].mxu0
        %1414 = vdwg.mxu0
        %v1415 = vadd.f32 %v581, %v1410
        %v1416 = vld [vmem:[#allocation8] sm:$0x1]
        %v1417 = vld [vmem:[#allocation10] sm:$0x1]
        %v1418 = vsel %vm584, %v1415, 0.0
        %1419 = vadd.xlane.f32.xlu0 %v1418
        %v1420 = vpop.xlane.xlu0 %1419
        %v1421 = vmul.f32 %v1420, %v588
        %v1422 = vsub.f32 %v1415, %v1421
        %v1423 = vmul.f32 %v1422, %v1422
        %v1424 = vsel %vm584, %v1423, 0.0
        %1425 = vadd.xlane.f32.xlu0 %v1424
        %v1426 = vpop.xlane.xlu0 %1425
        %v1427 = vmul.f32 %v1426, %v588
        %v1428 = vadd.f32 %v1427, 1e-05
        %v1429 = vrsqrt.pop %v1428
        %v1430 = vmul.f32 %v1422, %v1429
        %v1432 = vlaneseq
        %v1433 = vshrl.u32 %v1432, 7
        %v1434 = vsub.s32 0, %v1433
        %v1435 = vrot.slane %v1416, %v1434
        %v1437 = vmul.f32 %v1430, %v1435
        %v1439 = vlaneseq
        %v1440 = vshrl.u32 %v1439, 7
        %v1441 = vsub.s32 0, %v1440
        %v1442 = vrot.slane %v1417, %v1441
        %v1444 = vadd.f32 %v1437, %v1442
        %v1445 = vpack.c.bf16 %v1444, %v1444
        %v1446 = vld [vmem:[%s10] sm:$0xf]
        %v1447 = vld [vmem:[%s10 + $0x4] sm:$0xf]
        %v1448 = vld [vmem:[%s10 + $0x8] sm:$0xf]
        %v1449 = vld [vmem:[%s10 + $0xc] sm:$0xf]
        %v1450 = vld [vmem:[%s11] sm:$0x1]
        %v1452 = vlaneseq
        %v1453 = vshrl.u32 %v1452, 7
        %v1454 = vsub.s32 0, %v1453
        %v1455 = vrot.slane %v1450, %v1454
        %v1461 = vunpack.c.l.b16 %v1446
        %v1462 = vunpack.c.l.b16 %v1447
        %v1463 = vunpack.c.l.b16 %v1448
        %v1464 = vunpack.c.l.b16 %v1449
        %v1465 = vpack.c.b16 %v1462, %v1461
        %v1466 = vpack.c.b16 %v1464, %v1463
        %v1470 = vsel %vm584, %v1445, 0
        %1472 = vmatprep.subr.bf16.mxu0 0
        %1473 = vmatpush1.bf16.msra.mxu0 %v1465
        %1474 = vmatprep.subr.bf16.mxu0 0
        %1475 = vmatpush1.bf16.msra.mxu0 %v1466
        %1476 = vmatprep.subr.bf16.mxu0 0
        %1477 = vmatpush1.bf16.msra.mxu0 0
        %1478 = vmatprep.subr.bf16.mxu0 0
        %1479 = vmatpush1.bf16.msra.mxu0 0
        %1480 = vmatprep.subr.bf16.mxu0 0
        %1481 = vmatpush1.bf16.msra.mxu0 0
        %1482 = vmatprep.subr.bf16.mxu0 0
        %1483 = vmatpush1.bf16.msra.mxu0 0
        %1484 = vmatprep.subr.bf16.mxu0 0
        %1485 = vmatpush1.bf16.msra.mxu0 0
        %1486 = vmatprep.subr.bf16.mxu0 0
        %1487 = vmatpush1.bf16.msra.mxu0 0
        %1488 = vmatprep.subr.bf16.mxu0 0
        %1489 = vmatpush1.bf16.msra.mxu0 0
        %1490 = vmatprep.subr.bf16.mxu0 0
        %1491 = vmatpush1.bf16.msra.mxu0 0
        %1492 = vmatprep.subr.bf16.mxu0 0
        %1493 = vmatpush1.bf16.msra.mxu0 0
        %1494 = vmatprep.subr.bf16.mxu0 0
        %1495 = vmatpush1.bf16.msra.mxu0 0
        %1496 = vmatprep.subr.bf16.mxu0 0
        %1497 = vmatpush1.bf16.msra.mxu0 0
        %1498 = vmatprep.subr.bf16.mxu0 0
        %1499 = vmatpush1.bf16.msra.mxu0 0
        %1500 = vmatprep.subr.bf16.mxu0 0
        %1501 = vmatpush1.bf16.msra.mxu0 0
        %1502 = vmatprep.subr.bf16.mxu0 0
        %1503 = vmatpush1.bf16.msra.mxu0 0
        %1504 = vmatprep.mubr.bf16.mxu0 0
        %1505 = vmatmul.mubr.bf16.gmra.mrb[0].mxu0 %v1470
        %v1506 = vpop.f32.mrb[0].mxu0
        %v1507 = vadd.f32 %v1455, %v1506
        %v1508 = vpop.f32.mrb[0].mxu0
        %v1509 = vpop.f32.mrb[0].mxu0
        %v1510 = vpop.f32.mrb[0].mxu0
        %1511 = vdwg.mxu0
        %v1512 = vmul.f32 %v1507, 0.5
        %v1513 = vmul.f32 %v1507, 0.70710677
        %v1514 = verf.f32.pop %v1513
        %v1515 = vadd.f32 %v1514, 1.0
        %v1516 = vmul.f32 %v1512, %v1515
        %v1517 = vpack.c.bf16 %v1516, %v1516
        %v1518 = vld [vmem:[%s12] sm:$0xf]
        %v1519 = vld [vmem:[%s12 + $0x4] sm:$0xf]
        %v1520 = vld [vmem:[%s12 + $0x8] sm:$0xf]
        %v1521 = vld [vmem:[%s12 + $0xc] sm:$0xf]
        %v1522 = vld [vmem:[%s12 + $0x10] sm:$0xf]
        %v1523 = vld [vmem:[%s12 + $0x14] sm:$0xf]
        %v1524 = vld [vmem:[%s12 + $0x18] sm:$0xf]
        %v1525 = vld [vmem:[%s12 + $0x1c] sm:$0xf]
        %v1526 = vld [vmem:[%s12 + $0x20] sm:$0xf]
        %v1527 = vld [vmem:[%s12 + $0x24] sm:$0xf]
        %v1528 = vld [vmem:[%s12 + $0x28] sm:$0xf]
        %v1529 = vld [vmem:[%s12 + $0x2c] sm:$0xf]
        %v1530 = vld [vmem:[%s12 + $0x30] sm:$0xf]
        %v1531 = vld [vmem:[%s12 + $0x34] sm:$0xf]
        %v1532 = vld [vmem:[%s12 + $0x38] sm:$0xf]
        %v1533 = vld [vmem:[%s12 + $0x3c] sm:$0xf]
        %v1534 = vld [vmem:[%s13] sm:$0x1]
        %v1536 = vlaneseq
        %v1537 = vshrl.u32 %v1536, 7
        %v1538 = vsub.s32 0, %v1537
        %v1539 = vrot.slane %v1534, %v1538
        %v1557 = vunpack.c.l.b16 %v1518
        %v1558 = vunpack.c.l.b16 %v1519
        %v1559 = vunpack.c.l.b16 %v1520
        %v1560 = vunpack.c.l.b16 %v1521
        %v1561 = vunpack.c.l.b16 %v1522
        %v1562 = vunpack.c.l.b16 %v1523
        %v1563 = vunpack.c.l.b16 %v1524
        %v1564 = vunpack.c.l.b16 %v1525
        %v1565 = vunpack.c.l.b16 %v1526
        %v1566 = vunpack.c.l.b16 %v1527
        %v1567 = vunpack.c.l.b16 %v1528
        %v1568 = vunpack.c.l.b16 %v1529
        %v1569 = vunpack.c.l.b16 %v1530
        %v1570 = vunpack.c.l.b16 %v1531
        %v1571 = vunpack.c.l.b16 %v1532
        %v1572 = vunpack.c.l.b16 %v1533
        %v1573 = vpack.c.b16 %v1558, %v1557
        %v1574 = vpack.c.b16 %v1560, %v1559
        %v1575 = vpack.c.b16 %v1562, %v1561
        %v1576 = vpack.c.b16 %v1564, %v1563
        %v1577 = vpack.c.b16 %v1566, %v1565
        %v1578 = vpack.c.b16 %v1568, %v1567
        %v1579 = vpack.c.b16 %v1570, %v1569
        %v1580 = vpack.c.b16 %v1572, %v1571
        %1589 = vmatprep.subr.bf16.mxu0 0
        %1590 = vmatpush1.bf16.msra.mxu0 %v1573
        %1591 = vmatprep.subr.bf16.mxu0 0
        %1592 = vmatpush1.bf16.msra.mxu0 %v1574
        %1593 = vmatprep.subr.bf16.mxu0 0
        %1594 = vmatpush1.bf16.msra.mxu0 %v1575
        %1595 = vmatprep.subr.bf16.mxu0 0
        %1596 = vmatpush1.bf16.msra.mxu0 %v1576
        %1597 = vmatprep.subr.bf16.mxu0 0
        %1598 = vmatpush1.bf16.msra.mxu0 %v1577
        %1599 = vmatprep.subr.bf16.mxu0 0
        %1600 = vmatpush1.bf16.msra.mxu0 %v1578
        %1601 = vmatprep.subr.bf16.mxu0 0
        %1602 = vmatpush1.bf16.msra.mxu0 %v1579
        %1603 = vmatprep.subr.bf16.mxu0 0
        %1604 = vmatpush1.bf16.msra.mxu0 %v1580
        %1605 = vmatprep.subr.bf16.mxu0 0
        %1606 = vmatpush1.bf16.msra.mxu0 0
        %1607 = vmatprep.subr.bf16.mxu0 0
        %1608 = vmatpush1.bf16.msra.mxu0 0
        %1609 = vmatprep.subr.bf16.mxu0 0
        %1610 = vmatpush1.bf16.msra.mxu0 0
        %1611 = vmatprep.subr.bf16.mxu0 0
        %1612 = vmatpush1.bf16.msra.mxu0 0
        %1613 = vmatprep.subr.bf16.mxu0 0
        %1614 = vmatpush1.bf16.msra.mxu0 0
        %1615 = vmatprep.subr.bf16.mxu0 0
        %1616 = vmatpush1.bf16.msra.mxu0 0
        %1617 = vmatprep.subr.bf16.mxu0 0
        %1618 = vmatpush1.bf16.msra.mxu0 0
        %1619 = vmatprep.subr.bf16.mxu0 0
        %1620 = vmatpush1.bf16.msra.mxu0 0
        %1621 = vmatprep.mubr.bf16.mxu0 0
        %1622 = vmatmul.mubr.bf16.gmra.mrb[0].mxu0 %v1517
        %v1623 = vpop.f32.mrb[0].mxu0
        %v1624 = vadd.f32 %v1539, %v1623
        %v1625 = vpop.f32.mrb[0].mxu0
        %v1626 = vpop.f32.mrb[0].mxu0
        %v1627 = vpop.f32.mrb[0].mxu0
        %1628 = vdwg.mxu0
        %v1629 = vadd.f32 %v1415, %v1624
        %1630 = vst.msk [vmem:[%s572] sm:$0xff] %vm584, %v1629
        %s1631 = sand.u32 %s397, 1
        %s1632 = scalar_lea.sflag [#allocation7], %s1631
        %s1633 = sand.u32 %s397, 1
        %s1634 = smul.addr %s1633, 8
        %s1635 = scalar_lea.vmem [#allocation11], %s1634
        // Predicated region
        $region104: #{tpu_custom_call.1} parent=83 // pred_check
          %p1636 = pneg %p407
        $region105: #{tpu_custom_call.1} parent=83 // pred_check_branch
          %1638 = sbr.rel (%p1636) target = $region107
        $region106: #{tpu_custom_call.1} parent=83 // pred_region
          %s1640 = ssub.s32 128, 128
          %1641 = vsyncadd %s1632, %s1640
          %s1642 = sadd.s32 %s37, %s36
          %s1643 = smul.addr %s1642, 128
          %s1644 = scalar_lea.hbm %s16, %s1643
          %s1646 = sshll.u32 %s1635, 4
          %s1647 = int_to_ptr.vmem [resolvable:$true] %s1646
          %1649 = dma.vmem_to_hbm [thread:$0]  %s1647, 128, %s1644, %s1632
        $region107: #{tpu_custom_call.1} parent=83 // pred_fallthru
          _
      $region84: #{tpu_custom_call.1} parent=5 // pred_fallthru
        _
      %p1650 = scmp.le.s32.totalorder 2, %s27
      // Predicated region
      $region108: #{tpu_custom_call.1} parent=5 // pred_check
        %p1651 = pneg %p1650
      $region109: #{tpu_custom_call.1} parent=5 // pred_check_branch
        %1653 = sbr.rel (%p1651) target = $region111
      $region110: #{tpu_custom_call.1} parent=5 // pred_region
        %s1654 = ssub.s32 %s27, 2
        // Predicated region
        $region112: #{tpu_custom_call.1} parent=110 // pred_check
          %p1655 = pneg %p413
        $region113: #{tpu_custom_call.1} parent=110 // pred_check_branch
          %1657 = sbr.rel (%p1655) target = $region115
        $region114: #{tpu_custom_call.1} parent=110 // pred_region
          %s1658 = sand.u32 %s398, 1
          %s1659 = scalar_lea.sflag [#allocation7], %s1658
          %s1660 = sand.u32 %s398, 1
          %s1661 = smul.addr %s1660, 8
          %s1662 = scalar_lea.vmem [#allocation11], %s1661
          %1663 = dma.done %s1659, 128
        $region115: #{tpu_custom_call.1} parent=110 // pred_fallthru
          _
      $region111: #{tpu_custom_call.1} parent=5 // pred_fallthru
        _
    $region6: #{tpu_custom_call.1} parent=1 // loop_footer
      %s31 = sadd.s32 1, %s27
    $region7: #{tpu_custom_call.1} parent=1 // loop_footer_branch
      %26 = sbr.rel target = $region3
    $region8: #{tpu_custom_call.1} parent=1 // loop_exit
      _
    %1664 = vsyncpa [#allocation6], 1
    %s1665 = scalar_lea.sflag [#allocation6], 1
    %1666 = vsyncpa %s1665, 1
    %1667 = vsyncpa [#allocation9], 1
    %1668 = vsyncpa [#allocation7], 1
    %s1669 = scalar_lea.sflag [#allocation7], 1
    %1670 = vsyncpa %s1669, 1

</llo_original>
